<compile_context>
chip_gen: v6e
topology: v6e:2x2x1
jax: 0.10.0
libtpu: 0.0.40
codegen_flags: <defaults>
</compile_context>

<pallas_src>
import math

import jax
import jax.numpy as jnp
from jax.experimental import pallas as pl
from jax.experimental.pallas import tpu as pltpu


def _make_temporal_rnn_kernel(T, B, L):
    """Kernel closure over the static time/batch/layer extents."""

    def kernel(x_ref, wih_ref, whh_ref, b_ref, out_ref, seq_ref):
        """
        One grid step = one full multi-layer RNN pass (pass index s = program_id(0)).

        x_ref   : (T*B, H)    external noise, time-major-flat (row = t*B + b); read only at s == 0
        wih_ref : (L, H, H)   W_ih^T per layer (resident across the whole grid)
        whh_ref : (L, H, H)   W_hh^T per layer (resident)
        b_ref   : (L, 1, H)   b_ih + b_hh (resident)
        out_ref : (1, T*B, H) output block of pass s (top-layer sequence)
        seq_ref : (T*B, H)    f32 scratch; carries the sequence across layers AND passes
        """
        s = pl.program_id(0)

        # Pass 0 reads the external noise; later passes re-use the previous
        # pass's output, which is still sitting in seq_ref.
        @pl.when(s == 0)
        def _():
            seq_ref[...] = x_ref[...]

        for layer in range(L):                       # static layer loop
            w_hh = whh_ref[layer]                    # (H, H), held in vregs
            # Hoisted input projection for ALL timesteps: one big MXU matmul
            # (no recurrence dependence), plus the pre-summed bias.
            pre = (
                jnp.dot(seq_ref[...], wih_ref[layer],
                        preferred_element_type=jnp.float32)
                + b_ref[layer]
            )                                        # (T*B, H)

            # h0 = 0 for every layer / every pass (matches nn.RNN default).
            h = jnp.zeros((B, w_hh.shape[-1]), jnp.float32)
            for t in range(T):                       # fully unrolled recurrence
                h = jnp.tanh(
                    jnp.dot(h, w_hh, preferred_element_type=jnp.float32)
                    + pre[t * B:(t + 1) * B, :]
                )
                seq_ref[pl.ds(t * B, B), :] = h      # becomes next layer's input

        out_ref[0] = seq_ref[...]                    # top-layer sequence of pass s

    return kernel


def temporal_vectors_forward(noise_bth, params, sequence_length):
    """Mirrors TemporalVectors.forward: returns a list of (B, T, H) arrays."""
    w_ih_t, w_hh_t, bias = params
    B, T, D = noise_bth.shape
    L, _, H = w_hh_t.shape
    assert D == H, "module feeds its output back in, so latent_vector_size == hidden_size"

    # time-major flatten: row index = t*B + b  (single XLA transpose on the way in)
    x_flat = jnp.transpose(noise_bth, (1, 0, 2)).reshape(T * B, D).astype(jnp.float32)

    kernel = _make_temporal_rnn_kernel(T, B, L)
    out = pl.pallas_call(
        kernel,
        out_shape=jax.ShapeDtypeStruct((sequence_length, T * B, H), jnp.float32),
        grid_spec=pltpu.PrefetchScalarGridSpec(
            num_scalar_prefetch=0,
            grid=(sequence_length,),
            in_specs=[
                pl.BlockSpec((T * B, D), lambda s: (0, 0)),      # noise (used at s==0)
                pl.BlockSpec((L, D, H), lambda s: (0, 0, 0)),    # W_ih^T (resident)
                pl.BlockSpec((L, H, H), lambda s: (0, 0, 0)),    # W_hh^T (resident)
                pl.BlockSpec((L, 1, H), lambda s: (0, 0, 0)),    # bias (resident)
            ],
            out_specs=pl.BlockSpec((1, T * B, H), lambda s: (s, 0, 0)),
            scratch_shapes=[pltpu.VMEM((T * B, H), jnp.float32)],
        ),
        compiler_params=pltpu.CompilerParams(
            # sequential dependence across passes (scratch carry) -> arbitrary
            dimension_semantics=("arbitrary",),
        ),
    )(x_flat, w_ih_t, w_hh_t, bias)

    # Single reshape + transpose at the end: (S, T*B, H) -> (S, B, T, H)
    out_sbth = jnp.transpose(out.reshape(sequence_length, T, B, H), (0, 2, 1, 3))
    return [out_sbth[i] for i in range(sequence_length)]


def init_rnn_params(key, latent_vector_size, hidden_size, num_layers):
    """nn.RNN default init: U(-1/sqrt(hidden), 1/sqrt(hidden)).

    Weights are pre-transposed to (L, H_in, H) so the kernel computes x @ W
    directly, and b_ih + b_hh are pre-summed into a single (L, 1, H) bias."""
    assert latent_vector_size == hidden_size
    bound = 1.0 / math.sqrt(hidden_size)
    ks = jax.random.split(key, 4 * num_layers)
    w_ih, w_hh, b_sum = [], [], []
    for l in range(num_layers):
        in_size = latent_vector_size if l == 0 else hidden_size
        w_ih.append(jax.random.uniform(ks[4 * l + 0], (hidden_size, in_size),
                                       jnp.float32, -bound, bound))
        w_hh.append(jax.random.uniform(ks[4 * l + 1], (hidden_size, hidden_size),
                                       jnp.float32, -bound, bound))
        b_ih = jax.random.uniform(ks[4 * l + 2], (hidden_size,), jnp.float32, -bound, bound)
        b_hh = jax.random.uniform(ks[4 * l + 3], (hidden_size,), jnp.float32, -bound, bound)
        b_sum.append(b_ih + b_hh)
    w_ih_t = jnp.stack([w.T for w in w_ih])          # (L, H, H)
    w_hh_t = jnp.stack([w.T for w in w_hh])          # (L, H, H)
    bias = jnp.stack(b_sum)[:, None, :]              # (L, 1, H)
    return w_ih_t, w_hh_t, bias


def _reference_rnn(noise_bth, params):
    """Pure-JAX reference of one rnn() application (batch_first, h0=0)."""
    w_ih_t, w_hh_t, bias = params
    L = w_ih_t.shape[0]
    x = noise_bth
    for l in range(L):
        B, T, _ = x.shape
        H = w_hh_t.shape[-1]
        h = jnp.zeros((B, H), jnp.float32)
        outs = []
        for t in range(T):
            h = jnp.tanh(x[:, t, :] @ w_ih_t[l] + h @ w_hh_t[l] + bias[l])
            outs.append(h)
        x = jnp.stack(outs, axis=1)
    return x


if __name__ == "__main__":
    # small shapes consistent with the module
    batch = 2
    time_steps = 8
    latent_vector_size = 32
    hidden_size = 32          # must equal latent_vector_size (module feeds output back in)
    num_layers = 2
    sequence_length = 3       # number of repeated rnn applications

    key = jax.random.PRNGKey(0)
    k_param, k_noise = jax.random.split(key)
    params = init_rnn_params(k_param, latent_vector_size, hidden_size, num_layers)
    noise = jax.random.normal(k_noise, (batch, time_steps, latent_vector_size), jnp.float32)

    latent_vectors = temporal_vectors_forward(noise, params, sequence_length)
    latent_vectors = [jax.block_until_ready(v) for v in latent_vectors]

    # sanity-check against a pure-JAX reference of the same recurrence
    ref = noise
    for i in range(sequence_length):
        ref = _reference_rnn(ref, params)
        assert latent_vectors[i].shape == (batch, time_steps, hidden_size)
        assert jnp.allclose(latent_vectors[i], ref, atol=1e-5, rtol=1e-5), f"mismatch at pass {i}"

    print("KERNEL_OK")
</pallas_src>

<mosaic_0001>
module attributes {stable_mosaic.version = 11 : i64} {
  func.func @kernel(%arg0: i32, %arg1: memref<16x32xf32, #tpu.memory_space<vmem>>, %arg2: memref<2x32x32xf32, #tpu.memory_space<vmem>>, %arg3: memref<2x32x32xf32, #tpu.memory_space<vmem>>, %arg4: memref<2x1x32xf32, #tpu.memory_space<vmem>>, %arg5: memref<1x16x32xf32, #tpu.memory_space<vmem>>, %arg6: memref<16x32xf32, #tpu.memory_space<vmem>>) attributes {dimension_semantics = [#tpu.dimension_semantics<arbitrary>], iteration_bounds = array<i64: 3>, scalar_prefetch = 0 : i64, scratch_operands = 1 : i64, tpu.core_type = #tpu.core_type<tc>, window_params = [{pipeline_mode = #tpu.pipeline_mode<synchronous>, transform_indices = @transform_0, window_bounds = array<i64: 16, 32>}, {pipeline_mode = #tpu.pipeline_mode<synchronous>, transform_indices = @transform_1, window_bounds = array<i64: 2, 32, 32>}, {pipeline_mode = #tpu.pipeline_mode<synchronous>, transform_indices = @transform_2, window_bounds = array<i64: 2, 32, 32>}, {pipeline_mode = #tpu.pipeline_mode<synchronous>, transform_indices = @transform_3, window_bounds = array<i64: 2, 1, 32>}, {transform_indices = @transform_4, window_bounds = array<i64: 1, 16, 32>}]} {
    %c0_i32 = arith.constant 0 : i32
    %0 = arith.cmpi eq, %arg0, %c0_i32 : i32
    %1 = arith.extui %0 : i1 to i32
    %c0_i32_0 = arith.constant 0 : i32
    %2 = arith.cmpi ne, %1, %c0_i32_0 : i32
    scf.if %2 {
      %c0_70 = arith.constant 0 : index
      %c0_71 = arith.constant 0 : index
      %109 = vector.load %arg1[%c0_70, %c0_71] : memref<16x32xf32, #tpu.memory_space<vmem>>, vector<16x32xf32>
      %c0_72 = arith.constant 0 : index
      %c0_73 = arith.constant 0 : index
      %110 = vector.load %arg6[%c0_72, %c0_73] : memref<16x32xf32, #tpu.memory_space<vmem>>, vector<16x32xf32>
      tpu.vector_store %arg6[%c0_72, %c0_73], %109 {strides = array<i32>} : memref<16x32xf32, #tpu.memory_space<vmem>>, vector<16x32xf32>,
    } else {
    }
    %c0 = arith.constant 0 : index
    %c0_1 = arith.constant 0 : index
    %c0_2 = arith.constant 0 : index
    %3 = vector.load %arg3[%c0, %c0_1, %c0_2] : memref<2x32x32xf32, #tpu.memory_space<vmem>>, vector<1x32x32xf32>
    %4 = vector.shape_cast %3 : vector<1x32x32xf32> to vector<32x32xf32>
    %c0_3 = arith.constant 0 : index
    %c0_4 = arith.constant 0 : index
    %5 = vector.load %arg6[%c0_3, %c0_4] : memref<16x32xf32, #tpu.memory_space<vmem>>, vector<16x32xf32>
    %c0_5 = arith.constant 0 : index
    %c0_6 = arith.constant 0 : index
    %c0_7 = arith.constant 0 : index
    %6 = vector.load %arg2[%c0_5, %c0_6, %c0_7] : memref<2x32x32xf32, #tpu.memory_space<vmem>>, vector<1x32x32xf32>
    %7 = vector.shape_cast %6 : vector<1x32x32xf32> to vector<32x32xf32>
    %cst = arith.constant dense<0.000000e+00> : vector<16x32xf32>
    %8 = tpu.matmul %5, %7, %cst {dimension_numbers = #tpu.dot_dimension_numbers<[1], [0], [0], [1], [0, 0, 1, 1], [], []>} : vector<16x32xf32>, vector<32x32xf32>, vector<16x32xf32> -> vector<16x32xf32>
    %c0_8 = arith.constant 0 : index
    %c0_9 = arith.constant 0 : index
    %c0_10 = arith.constant 0 : index
    %9 = vector.load %arg4[%c0_8, %c0_9, %c0_10] : memref<2x1x32xf32, #tpu.memory_space<vmem>>, vector<1x1x32xf32>
    %10 = vector.shape_cast %9 : vector<1x1x32xf32> to vector<1x32xf32>
    %11 = vector.broadcast %10 : vector<1x32xf32> to vector<16x32xf32>
    %12 = arith.addf %8, %11 : vector<16x32xf32>
    %cst_11 = arith.constant 0.000000e+00 : f32
    %13 = vector.broadcast %cst_11 : f32 to vector<2x32xf32>
    %cst_12 = arith.constant dense<0.000000e+00> : vector<2x32xf32>
    %14 = tpu.matmul %13, %4, %cst_12 {dimension_numbers = #tpu.dot_dimension_numbers<[1], [0], [0], [1], [0, 0, 1, 1], [], []>} : vector<2x32xf32>, vector<32x32xf32>, vector<2x32xf32> -> vector<2x32xf32>
    %15 = vector.extract_strided_slice %12 {offsets = [0, 0], sizes = [2, 32], strides = [1, 1]} : vector<16x32xf32> to vector<2x32xf32>
    %16 = arith.addf %14, %15 : vector<2x32xf32>
    %17 = math.tanh %16 : vector<2x32xf32>
    %c0_13 = arith.constant 0 : index
    %c0_14 = arith.constant 0 : index
    %18 = vector.load %arg6[%c0_13, %c0_14] : memref<16x32xf32, #tpu.memory_space<vmem>>, vector<2x32xf32>
    tpu.vector_store %arg6[%c0_13, %c0_14], %17 {strides = array<i32>} : memref<16x32xf32, #tpu.memory_space<vmem>>, vector<2x32xf32>,
    %cst_15 = arith.constant dense<0.000000e+00> : vector<2x32xf32>
    %19 = tpu.matmul %17, %4, %cst_15 {dimension_numbers = #tpu.dot_dimension_numbers<[1], [0], [0], [1], [0, 0, 1, 1], [], []>} : vector<2x32xf32>, vector<32x32xf32>, vector<2x32xf32> -> vector<2x32xf32>
    %20 = vector.extract_strided_slice %12 {offsets = [2, 0], sizes = [2, 32], strides = [1, 1]} : vector<16x32xf32> to vector<2x32xf32>
    %21 = arith.addf %19, %20 : vector<2x32xf32>
    %22 = math.tanh %21 : vector<2x32xf32>
    %c2 = arith.constant 2 : index
    %c0_16 = arith.constant 0 : index
    %23 = vector.load %arg6[%c2, %c0_16] : memref<16x32xf32, #tpu.memory_space<vmem>>, vector<2x32xf32>
    tpu.vector_store %arg6[%c2, %c0_16], %22 {strides = array<i32>} : memref<16x32xf32, #tpu.memory_space<vmem>>, vector<2x32xf32>,
    %cst_17 = arith.constant dense<0.000000e+00> : vector<2x32xf32>
    %24 = tpu.matmul %22, %4, %cst_17 {dimension_numbers = #tpu.dot_dimension_numbers<[1], [0], [0], [1], [0, 0, 1, 1], [], []>} : vector<2x32xf32>, vector<32x32xf32>, vector<2x32xf32> -> vector<2x32xf32>
    %25 = vector.extract_strided_slice %12 {offsets = [4, 0], sizes = [2, 32], strides = [1, 1]} : vector<16x32xf32> to vector<2x32xf32>
    %26 = arith.addf %24, %25 : vector<2x32xf32>
    %27 = math.tanh %26 : vector<2x32xf32>
    %c4 = arith.constant 4 : index
    %c0_18 = arith.constant 0 : index
    %28 = vector.load %arg6[%c4, %c0_18] : memref<16x32xf32, #tpu.memory_space<vmem>>, vector<2x32xf32>
    tpu.vector_store %arg6[%c4, %c0_18], %27 {strides = array<i32>} : memref<16x32xf32, #tpu.memory_space<vmem>>, vector<2x32xf32>,
    %cst_19 = arith.constant dense<0.000000e+00> : vector<2x32xf32>
    %29 = tpu.matmul %27, %4, %cst_19 {dimension_numbers = #tpu.dot_dimension_numbers<[1], [0], [0], [1], [0, 0, 1, 1], [], []>} : vector<2x32xf32>, vector<32x32xf32>, vector<2x32xf32> -> vector<2x32xf32>
    %30 = vector.extract_strided_slice %12 {offsets = [6, 0], sizes = [2, 32], strides = [1, 1]} : vector<16x32xf32> to vector<2x32xf32>
    %31 = arith.addf %29, %30 : vector<2x32xf32>
    %32 = math.tanh %31 : vector<2x32xf32>
    %c6 = arith.constant 6 : index
    %c0_20 = arith.constant 0 : index
    %33 = vector.load %arg6[%c6, %c0_20] : memref<16x32xf32, #tpu.memory_space<vmem>>, vector<2x32xf32>
    tpu.vector_store %arg6[%c6, %c0_20], %32 {strides = array<i32>} : memref<16x32xf32, #tpu.memory_space<vmem>>, vector<2x32xf32>,
    %cst_21 = arith.constant dense<0.000000e+00> : vector<2x32xf32>
    %34 = tpu.matmul %32, %4, %cst_21 {dimension_numbers = #tpu.dot_dimension_numbers<[1], [0], [0], [1], [0, 0, 1, 1], [], []>} : vector<2x32xf32>, vector<32x32xf32>, vector<2x32xf32> -> vector<2x32xf32>
    %35 = vector.extract_strided_slice %12 {offsets = [8, 0], sizes = [2, 32], strides = [1, 1]} : vector<16x32xf32> to vector<2x32xf32>
    %36 = arith.addf %34, %35 : vector<2x32xf32>
    %37 = math.tanh %36 : vector<2x32xf32>
    %c8 = arith.constant 8 : index
    %c0_22 = arith.constant 0 : index
    %38 = vector.load %arg6[%c8, %c0_22] : memref<16x32xf32, #tpu.memory_space<vmem>>, vector<2x32xf32>
    tpu.vector_store %arg6[%c8, %c0_22], %37 {strides = array<i32>} : memref<16x32xf32, #tpu.memory_space<vmem>>, vector<2x32xf32>,
    %cst_23 = arith.constant dense<0.000000e+00> : vector<2x32xf32>
    %39 = tpu.matmul %37, %4, %cst_23 {dimension_numbers = #tpu.dot_dimension_numbers<[1], [0], [0], [1], [0, 0, 1, 1], [], []>} : vector<2x32xf32>, vector<32x32xf32>, vector<2x32xf32> -> vector<2x32xf32>
    %40 = vector.extract_strided_slice %12 {offsets = [10, 0], sizes = [2, 32], strides = [1, 1]} : vector<16x32xf32> to vector<2x32xf32>
    %41 = arith.addf %39, %40 : vector<2x32xf32>
    %42 = math.tanh %41 : vector<2x32xf32>
    %c10 = arith.constant 10 : index
    %c0_24 = arith.constant 0 : index
    %43 = vector.load %arg6[%c10, %c0_24] : memref<16x32xf32, #tpu.memory_space<vmem>>, vector<2x32xf32>
    tpu.vector_store %arg6[%c10, %c0_24], %42 {strides = array<i32>} : memref<16x32xf32, #tpu.memory_space<vmem>>, vector<2x32xf32>,
    %cst_25 = arith.constant dense<0.000000e+00> : vector<2x32xf32>
    %44 = tpu.matmul %42, %4, %cst_25 {dimension_numbers = #tpu.dot_dimension_numbers<[1], [0], [0], [1], [0, 0, 1, 1], [], []>} : vector<2x32xf32>, vector<32x32xf32>, vector<2x32xf32> -> vector<2x32xf32>
    %45 = vector.extract_strided_slice %12 {offsets = [12, 0], sizes = [2, 32], strides = [1, 1]} : vector<16x32xf32> to vector<2x32xf32>
    %46 = arith.addf %44, %45 : vector<2x32xf32>
    %47 = math.tanh %46 : vector<2x32xf32>
    %c12 = arith.constant 12 : index
    %c0_26 = arith.constant 0 : index
    %48 = vector.load %arg6[%c12, %c0_26] : memref<16x32xf32, #tpu.memory_space<vmem>>, vector<2x32xf32>
    tpu.vector_store %arg6[%c12, %c0_26], %47 {strides = array<i32>} : memref<16x32xf32, #tpu.memory_space<vmem>>, vector<2x32xf32>,
    %cst_27 = arith.constant dense<0.000000e+00> : vector<2x32xf32>
    %49 = tpu.matmul %47, %4, %cst_27 {dimension_numbers = #tpu.dot_dimension_numbers<[1], [0], [0], [1], [0, 0, 1, 1], [], []>} : vector<2x32xf32>, vector<32x32xf32>, vector<2x32xf32> -> vector<2x32xf32>
    %50 = vector.extract_strided_slice %12 {offsets = [14, 0], sizes = [2, 32], strides = [1, 1]} : vector<16x32xf32> to vector<2x32xf32>
    %51 = arith.addf %49, %50 : vector<2x32xf32>
    %52 = math.tanh %51 : vector<2x32xf32>
    %c14 = arith.constant 14 : index
    %c0_28 = arith.constant 0 : index
    %53 = vector.load %arg6[%c14, %c0_28] : memref<16x32xf32, #tpu.memory_space<vmem>>, vector<2x32xf32>
    tpu.vector_store %arg6[%c14, %c0_28], %52 {strides = array<i32>} : memref<16x32xf32, #tpu.memory_space<vmem>>, vector<2x32xf32>,
    %c1 = arith.constant 1 : index
    %c0_29 = arith.constant 0 : index
    %c0_30 = arith.constant 0 : index
    %54 = vector.load %arg3[%c1, %c0_29, %c0_30] : memref<2x32x32xf32, #tpu.memory_space<vmem>>, vector<1x32x32xf32>
    %55 = vector.shape_cast %54 : vector<1x32x32xf32> to vector<32x32xf32>
    %c0_31 = arith.constant 0 : index
    %c0_32 = arith.constant 0 : index
    %56 = vector.load %arg6[%c0_31, %c0_32] : memref<16x32xf32, #tpu.memory_space<vmem>>, vector<16x32xf32>
    %c1_33 = arith.constant 1 : index
    %c0_34 = arith.constant 0 : index
    %c0_35 = arith.constant 0 : index
    %57 = vector.load %arg2[%c1_33, %c0_34, %c0_35] : memref<2x32x32xf32, #tpu.memory_space<vmem>>, vector<1x32x32xf32>
    %58 = vector.shape_cast %57 : vector<1x32x32xf32> to vector<32x32xf32>
    %cst_36 = arith.constant dense<0.000000e+00> : vector<16x32xf32>
    %59 = tpu.matmul %56, %58, %cst_36 {dimension_numbers = #tpu.dot_dimension_numbers<[1], [0], [0], [1], [0, 0, 1, 1], [], []>} : vector<16x32xf32>, vector<32x32xf32>, vector<16x32xf32> -> vector<16x32xf32>
    %c1_37 = arith.constant 1 : index
    %c0_38 = arith.constant 0 : index
    %c0_39 = arith.constant 0 : index
    %60 = vector.load %arg4[%c1_37, %c0_38, %c0_39] : memref<2x1x32xf32, #tpu.memory_space<vmem>>, vector<1x1x32xf32>
    %61 = vector.shape_cast %60 : vector<1x1x32xf32> to vector<1x32xf32>
    %62 = vector.broadcast %61 : vector<1x32xf32> to vector<16x32xf32>
    %63 = arith.addf %59, %62 : vector<16x32xf32>
    %cst_40 = arith.constant 0.000000e+00 : f32
    %64 = vector.broadcast %cst_40 : f32 to vector<2x32xf32>
    %cst_41 = arith.constant dense<0.000000e+00> : vector<2x32xf32>
    %65 = tpu.matmul %64, %55, %cst_41 {dimension_numbers = #tpu.dot_dimension_numbers<[1], [0], [0], [1], [0, 0, 1, 1], [], []>} : vector<2x32xf32>, vector<32x32xf32>, vector<2x32xf32> -> vector<2x32xf32>
    %66 = vector.extract_strided_slice %63 {offsets = [0, 0], sizes = [2, 32], strides = [1, 1]} : vector<16x32xf32> to vector<2x32xf32>
    %67 = arith.addf %65, %66 : vector<2x32xf32>
    %68 = math.tanh %67 : vector<2x32xf32>
    %c0_42 = arith.constant 0 : index
    %c0_43 = arith.constant 0 : index
    %69 = vector.load %arg6[%c0_42, %c0_43] : memref<16x32xf32, #tpu.memory_space<vmem>>, vector<2x32xf32>
    tpu.vector_store %arg6[%c0_42, %c0_43], %68 {strides = array<i32>} : memref<16x32xf32, #tpu.memory_space<vmem>>, vector<2x32xf32>,
    %cst_44 = arith.constant dense<0.000000e+00> : vector<2x32xf32>
    %70 = tpu.matmul %68, %55, %cst_44 {dimension_numbers = #tpu.dot_dimension_numbers<[1], [0], [0], [1], [0, 0, 1, 1], [], []>} : vector<2x32xf32>, vector<32x32xf32>, vector<2x32xf32> -> vector<2x32xf32>
    %71 = vector.extract_strided_slice %63 {offsets = [2, 0], sizes = [2, 32], strides = [1, 1]} : vector<16x32xf32> to vector<2x32xf32>
    %72 = arith.addf %70, %71 : vector<2x32xf32>
    %73 = math.tanh %72 : vector<2x32xf32>
    %c2_45 = arith.constant 2 : index
    %c0_46 = arith.constant 0 : index
    %74 = vector.load %arg6[%c2_45, %c0_46] : memref<16x32xf32, #tpu.memory_space<vmem>>, vector<2x32xf32>
    tpu.vector_store %arg6[%c2_45, %c0_46], %73 {strides = array<i32>} : memref<16x32xf32, #tpu.memory_space<vmem>>, vector<2x32xf32>,
    %cst_47 = arith.constant dense<0.000000e+00> : vector<2x32xf32>
    %75 = tpu.matmul %73, %55, %cst_47 {dimension_numbers = #tpu.dot_dimension_numbers<[1], [0], [0], [1], [0, 0, 1, 1], [], []>} : vector<2x32xf32>, vector<32x32xf32>, vector<2x32xf32> -> vector<2x32xf32>
    %76 = vector.extract_strided_slice %63 {offsets = [4, 0], sizes = [2, 32], strides = [1, 1]} : vector<16x32xf32> to vector<2x32xf32>
    %77 = arith.addf %75, %76 : vector<2x32xf32>
    %78 = math.tanh %77 : vector<2x32xf32>
    %c4_48 = arith.constant 4 : index
    %c0_49 = arith.constant 0 : index
    %79 = vector.load %arg6[%c4_48, %c0_49] : memref<16x32xf32, #tpu.memory_space<vmem>>, vector<2x32xf32>
    tpu.vector_store %arg6[%c4_48, %c0_49], %78 {strides = array<i32>} : memref<16x32xf32, #tpu.memory_space<vmem>>, vector<2x32xf32>,
    %cst_50 = arith.constant dense<0.000000e+00> : vector<2x32xf32>
    %80 = tpu.matmul %78, %55, %cst_50 {dimension_numbers = #tpu.dot_dimension_numbers<[1], [0], [0], [1], [0, 0, 1, 1], [], []>} : vector<2x32xf32>, vector<32x32xf32>, vector<2x32xf32> -> vector<2x32xf32>
    %81 = vector.extract_strided_slice %63 {offsets = [6, 0], sizes = [2, 32], strides = [1, 1]} : vector<16x32xf32> to vector<2x32xf32>
    %82 = arith.addf %80, %81 : vector<2x32xf32>
    %83 = math.tanh %82 : vector<2x32xf32>
    %c6_51 = arith.constant 6 : index
    %c0_52 = arith.constant 0 : index
    %84 = vector.load %arg6[%c6_51, %c0_52] : memref<16x32xf32, #tpu.memory_space<vmem>>, vector<2x32xf32>
    tpu.vector_store %arg6[%c6_51, %c0_52], %83 {strides = array<i32>} : memref<16x32xf32, #tpu.memory_space<vmem>>, vector<2x32xf32>,
    %cst_53 = arith.constant dense<0.000000e+00> : vector<2x32xf32>
    %85 = tpu.matmul %83, %55, %cst_53 {dimension_numbers = #tpu.dot_dimension_numbers<[1], [0], [0], [1], [0, 0, 1, 1], [], []>} : vector<2x32xf32>, vector<32x32xf32>, vector<2x32xf32> -> vector<2x32xf32>
    %86 = vector.extract_strided_slice %63 {offsets = [8, 0], sizes = [2, 32], strides = [1, 1]} : vector<16x32xf32> to vector<2x32xf32>
    %87 = arith.addf %85, %86 : vector<2x32xf32>
    %88 = math.tanh %87 : vector<2x32xf32>
    %c8_54 = arith.constant 8 : index
    %c0_55 = arith.constant 0 : index
    %89 = vector.load %arg6[%c8_54, %c0_55] : memref<16x32xf32, #tpu.memory_space<vmem>>, vector<2x32xf32>
    tpu.vector_store %arg6[%c8_54, %c0_55], %88 {strides = array<i32>} : memref<16x32xf32, #tpu.memory_space<vmem>>, vector<2x32xf32>,
    %cst_56 = arith.constant dense<0.000000e+00> : vector<2x32xf32>
    %90 = tpu.matmul %88, %55, %cst_56 {dimension_numbers = #tpu.dot_dimension_numbers<[1], [0], [0], [1], [0, 0, 1, 1], [], []>} : vector<2x32xf32>, vector<32x32xf32>, vector<2x32xf32> -> vector<2x32xf32>
    %91 = vector.extract_strided_slice %63 {offsets = [10, 0], sizes = [2, 32], strides = [1, 1]} : vector<16x32xf32> to vector<2x32xf32>
    %92 = arith.addf %90, %91 : vector<2x32xf32>
    %93 = math.tanh %92 : vector<2x32xf32>
    %c10_57 = arith.constant 10 : index
    %c0_58 = arith.constant 0 : index
    %94 = vector.load %arg6[%c10_57, %c0_58] : memref<16x32xf32, #tpu.memory_space<vmem>>, vector<2x32xf32>
    tpu.vector_store %arg6[%c10_57, %c0_58], %93 {strides = array<i32>} : memref<16x32xf32, #tpu.memory_space<vmem>>, vector<2x32xf32>,
    %cst_59 = arith.constant dense<0.000000e+00> : vector<2x32xf32>
    %95 = tpu.matmul %93, %55, %cst_59 {dimension_numbers = #tpu.dot_dimension_numbers<[1], [0], [0], [1], [0, 0, 1, 1], [], []>} : vector<2x32xf32>, vector<32x32xf32>, vector<2x32xf32> -> vector<2x32xf32>
    %96 = vector.extract_strided_slice %63 {offsets = [12, 0], sizes = [2, 32], strides = [1, 1]} : vector<16x32xf32> to vector<2x32xf32>
    %97 = arith.addf %95, %96 : vector<2x32xf32>
    %98 = math.tanh %97 : vector<2x32xf32>
    %c12_60 = arith.constant 12 : index
    %c0_61 = arith.constant 0 : index
    %99 = vector.load %arg6[%c12_60, %c0_61] : memref<16x32xf32, #tpu.memory_space<vmem>>, vector<2x32xf32>
    tpu.vector_store %arg6[%c12_60, %c0_61], %98 {strides = array<i32>} : memref<16x32xf32, #tpu.memory_space<vmem>>, vector<2x32xf32>,
    %cst_62 = arith.constant dense<0.000000e+00> : vector<2x32xf32>
    %100 = tpu.matmul %98, %55, %cst_62 {dimension_numbers = #tpu.dot_dimension_numbers<[1], [0], [0], [1], [0, 0, 1, 1], [], []>} : vector<2x32xf32>, vector<32x32xf32>, vector<2x32xf32> -> vector<2x32xf32>
    %101 = vector.extract_strided_slice %63 {offsets = [14, 0], sizes = [2, 32], strides = [1, 1]} : vector<16x32xf32> to vector<2x32xf32>
    %102 = arith.addf %100, %101 : vector<2x32xf32>
    %103 = math.tanh %102 : vector<2x32xf32>
    %c14_63 = arith.constant 14 : index
    %c0_64 = arith.constant 0 : index
    %104 = vector.load %arg6[%c14_63, %c0_64] : memref<16x32xf32, #tpu.memory_space<vmem>>, vector<2x32xf32>
    tpu.vector_store %arg6[%c14_63, %c0_64], %103 {strides = array<i32>} : memref<16x32xf32, #tpu.memory_space<vmem>>, vector<2x32xf32>,
    %c0_65 = arith.constant 0 : index
    %c0_66 = arith.constant 0 : index
    %105 = vector.load %arg6[%c0_65, %c0_66] : memref<16x32xf32, #tpu.memory_space<vmem>>, vector<16x32xf32>
    %c0_67 = arith.constant 0 : index
    %c0_68 = arith.constant 0 : index
    %c0_69 = arith.constant 0 : index
    %106 = vector.load %arg5[%c0_67, %c0_68, %c0_69] : memref<1x16x32xf32, #tpu.memory_space<vmem>>, vector<1x16x32xf32>
    %107 = vector.shape_cast %106 : vector<1x16x32xf32> to vector<16x32xf32>
    %108 = vector.shape_cast %105 : vector<16x32xf32> to vector<1x16x32xf32>
    tpu.vector_store %arg5[%c0_67, %c0_68, %c0_69], %108 {strides = array<i32>} : memref<1x16x32xf32, #tpu.memory_space<vmem>>, vector<1x16x32xf32>,
    return
  }
  func.func @transform_0(%arg0: i32) -> (i32, i32) {
    %c0_i32 = arith.constant 0 : i32
    %c0_i32_0 = arith.constant 0 : i32
    %c0_i32_1 = arith.constant 0 : i32
    return %c0_i32, %c0_i32_0 : i32, i32
  }
  func.func @transform_1(%arg0: i32) -> (i32, i32, i32) {
    %c0_i32 = arith.constant 0 : i32
    %c0_i32_0 = arith.constant 0 : i32
    %c0_i32_1 = arith.constant 0 : i32
    %c0_i32_2 = arith.constant 0 : i32
    return %c0_i32, %c0_i32_0, %c0_i32_1 : i32, i32, i32
  }
  func.func @transform_2(%arg0: i32) -> (i32, i32, i32) {
    %c0_i32 = arith.constant 0 : i32
    %c0_i32_0 = arith.constant 0 : i32
    %c0_i32_1 = arith.constant 0 : i32
    %c0_i32_2 = arith.constant 0 : i32
    return %c0_i32, %c0_i32_0, %c0_i32_1 : i32, i32, i32
  }
  func.func @transform_3(%arg0: i32) -> (i32, i32, i32) {
    %c0_i32 = arith.constant 0 : i32
    %c0_i32_0 = arith.constant 0 : i32
    %c0_i32_1 = arith.constant 0 : i32
    %c0_i32_2 = arith.constant 0 : i32
    return %c0_i32, %c0_i32_0, %c0_i32_1 : i32, i32, i32
  }
  func.func @transform_4(%arg0: i32) -> (i32, i32, i32) {
    %c0_i32 = arith.constant 0 : i32
    %c0_i32_0 = arith.constant 0 : i32
    %c0_i32_1 = arith.constant 0 : i32
    return %arg0, %c0_i32, %c0_i32_0 : i32, i32, i32
  }
}

</mosaic_0001>

<llo_original>
// kernel: tpu_custom_call.1
$region0: #{tpu_custom_call.1}
  #allocation0 [shape = 'u32[]', space=smem, size = 0x4, offset = 0x4, fixed_abs, tag = 'smem constant byte address 0x4 - core index']
  #allocation1 [shape = 'u32[144,128]{1,0:T(1,128)}', space=vmem, size = 0x12000, scoped, tag = 'internal scratch']
  #allocation2 [shape = 'f32[16,32]{1,0:T(8,128)}', space=vmem, size = 0x2000, scoped, tag = 'scratch operand']
  %s0 = inlined_call_operand.hbm [shape: f32[16,32], index: 0, kind: input, shape index: {}]
  %s1 = inlined_call_operand.hbm [shape: f32[2,32,32], index: 1, kind: input, shape index: {}]
  %s2 = inlined_call_operand.hbm [shape: f32[2,32,32], index: 2, kind: input, shape index: {}]
  %s3 = inlined_call_operand.vmem [shape: f32[2,1,32], index: 3, kind: input, shape index: {}]
  %s4 = inlined_call_operand.hbm [shape: f32[3,16,32], index: 4, kind: output, shape index: {}]
  %s5 = sld [smem:[#allocation0]]
  $region65: #{tpu_custom_call.1} parent=0
    _
  %s7 = ssub.s32 1, %s5
  %s8 = scalar_select 0, %s7, %s5
  $region1: #{tpu_custom_call.1} parent=0
    #allocation3 [shape = 'u8[8192]{0}', space=vmem, size = 0x2000, scoped, tag = 'input window, operand 0, single buffered']
    #allocation4 [shape = 's32[2]{0}', space=sflag, size = 0x8, scoped, tag = 'scoped memory for tpu_custom_call.1']
    #allocation5 [shape = 's32[2]{0}', space=sflag, size = 0x8, scoped, tag = 'scoped memory for tpu_custom_call.1']
    #allocation6 [shape = 'u8[32768]{0}', space=vmem, size = 0x8000, scoped, tag = 'input window, operand 1, single buffered']
    #allocation7 [shape = 's32[1]{0}', space=sflag, size = 0x4, scoped, tag = 'scoped memory for tpu_custom_call.1']
    #allocation8 [shape = 'u8[32768]{0}', space=vmem, size = 0x8000, scoped, tag = 'input window, operand 2, single buffered']
    #allocation9 [shape = 'u8[16384]{0}', space=vmem, size = 0x4000, scoped, tag = 'output window, operand 0']
    %9 = vsyncpa [#allocation4], 0
    %10 = vsyncpa [#allocation7], 0
    %11 = vsyncpa [#allocation5], 0
    %s12 = scalar_lea.sflag [#allocation5], 1
    %13 = vsyncpa %s12, 0
    loop: start=0, step=1, limit=5
    $region2: #{tpu_custom_call.1} parent=1 // loop_pre_header
      _
    $region3: #{tpu_custom_call.1} parent=1 // loop_header
      %s15 = sphi 0, %s19
      %p16 = scmp.ge.s32.totalorder %s15, 5
      %s23 = sphi 0, %s23
      %s25 = sphi 0, %s23
      %s26 = sphi 0, %s25
      %s40 = sphi 0, %s26
      %s44 = sphi 0, %s44
      %s46 = sphi 0, %s44
      %s47 = sphi 0, %s46
      %s61 = sphi 0, %s47
      %s65 = sphi 0, %s65
      %s67 = sphi 0, %s65
      %s68 = sphi 0, %s67
      %s82 = sphi 0, %s68
      %s86 = sphi 0, %s86
      %s88 = sphi 0, %s86
      %s89 = sphi 0, %s88
      %s103 = sphi 0, %s89
      %s109 = sphi 0, %s111
      %s112 = sphi 0, %s109
      %s113 = sphi 0, %s112
      %s129 = sphi 0, %s113
    $region4: #{tpu_custom_call.1} parent=1 // loop_header_branch
      %18 = sbr.rel (%p16) target = $region8
    $region5: #{tpu_custom_call.1} parent=1 // loop_body
      %s20 = ssub.s32 %s15, 1
      %s21 = ssub.s32 %s15, 2
      %s22 = sadd.s32 %s15, 1
      %s24 = sadd.s32 %s23, 1
      %p27 = scmp.eq.s32.totalorder %s15, 2
      %p28 = scmp.ne.s32.totalorder %s23, %s25
      %p29 = scmp.eq.s32.totalorder %s15, 0
      %p30 = por %p28, %p29
      %p31 = scmp.ne.s32.totalorder %s23, %s25
      %p32 = scmp.eq.s32.totalorder %s20, 2
      %p33 = por %p31, %p32
      %p34 = scmp.ne.s32.totalorder %s25, %s26
      %p35 = scmp.eq.s32.totalorder %s20, 0
      %p36 = por %p34, %p35
      %p37 = scmp.ne.s32.totalorder %s25, %s26
      %p38 = scmp.eq.s32.totalorder %s21, 2
      %p39 = por %p37, %p38
      %p41 = scmp.ne.s32.totalorder %s26, %s40
      %p42 = scmp.eq.s32.totalorder %s21, 0
      %p43 = por %p41, %p42
      %s45 = sadd.s32 %s44, 1
      %p48 = scmp.eq.s32.totalorder %s15, 2
      %p49 = scmp.ne.s32.totalorder %s44, %s46
      %p50 = scmp.eq.s32.totalorder %s15, 0
      %p51 = por %p49, %p50
      %p52 = scmp.ne.s32.totalorder %s44, %s46
      %p53 = scmp.eq.s32.totalorder %s20, 2
      %p54 = por %p52, %p53
      %p55 = scmp.ne.s32.totalorder %s46, %s47
      %p56 = scmp.eq.s32.totalorder %s20, 0
      %p57 = por %p55, %p56
      %p58 = scmp.ne.s32.totalorder %s46, %s47
      %p59 = scmp.eq.s32.totalorder %s21, 2
      %p60 = por %p58, %p59
      %p62 = scmp.ne.s32.totalorder %s47, %s61
      %p63 = scmp.eq.s32.totalorder %s21, 0
      %p64 = por %p62, %p63
      %s66 = sadd.s32 %s65, 1
      %p69 = scmp.eq.s32.totalorder %s15, 2
      %p70 = scmp.ne.s32.totalorder %s65, %s67
      %p71 = scmp.eq.s32.totalorder %s15, 0
      %p72 = por %p70, %p71
      %p73 = scmp.ne.s32.totalorder %s65, %s67
      %p74 = scmp.eq.s32.totalorder %s20, 2
      %p75 = por %p73, %p74
      %p76 = scmp.ne.s32.totalorder %s67, %s68
      %p77 = scmp.eq.s32.totalorder %s20, 0
      %p78 = por %p76, %p77
      %p79 = scmp.ne.s32.totalorder %s67, %s68
      %p80 = scmp.eq.s32.totalorder %s21, 2
      %p81 = por %p79, %p80
      %p83 = scmp.ne.s32.totalorder %s68, %s82
      %p84 = scmp.eq.s32.totalorder %s21, 0
      %p85 = por %p83, %p84
      %s87 = sadd.s32 %s86, 1
      %p90 = scmp.eq.s32.totalorder %s15, 2
      %p91 = scmp.ne.s32.totalorder %s86, %s88
      %p92 = scmp.eq.s32.totalorder %s15, 0
      %p93 = por %p91, %p92
      %p94 = scmp.ne.s32.totalorder %s86, %s88
      %p95 = scmp.eq.s32.totalorder %s20, 2
      %p96 = por %p94, %p95
      %p97 = scmp.ne.s32.totalorder %s88, %s89
      %p98 = scmp.eq.s32.totalorder %s20, 0
      %p99 = por %p97, %p98
      %p100 = scmp.ne.s32.totalorder %s88, %s89
      %p101 = scmp.eq.s32.totalorder %s21, 2
      %p102 = por %p100, %p101
      %p104 = scmp.ne.s32.totalorder %s89, %s103
      %p105 = scmp.eq.s32.totalorder %s21, 0
      %p106 = por %p104, %p105
      %s107 = ssub.s32 %s15, %s22
      %p108 = scmp.eq.s32.totalorder %s107, 0
      %s110 = sadd.s32 %s109, 1
      %s111 = scalar_select %p108, %s109, %s110
      %p114 = pneg %p108
      %p115 = scmp.eq.s32.totalorder %s15, 2
      %p116 = por %p114, %p115
      %p117 = scmp.ne.s32.totalorder %s109, %s112
      %p118 = scmp.eq.s32.totalorder %s15, 0
      %p119 = por %p117, %p118
      %p120 = scmp.ne.s32.totalorder %s109, %s112
      %p121 = scmp.eq.s32.totalorder %s20, 2
      %p122 = por %p120, %p121
      %p123 = scmp.ne.s32.totalorder %s112, %s113
      %p124 = scmp.eq.s32.totalorder %s20, 0
      %p125 = por %p123, %p124
      %p126 = scmp.ne.s32.totalorder %s112, %s113
      %p127 = scmp.eq.s32.totalorder %s21, 2
      %p128 = por %p126, %p127
      %p130 = scmp.ne.s32.totalorder %s113, %s129
      %p131 = scmp.eq.s32.totalorder %s21, 0
      %p132 = por %p130, %p131
      %p133 = scmp.le.s32.totalorder 1, %s15
      %p134 = scmp.lt.s32.totalorder %s15, 4
      %p135 = pnand %p133, %p134
      %p136 = pneg %p135
      // Predicated region
      $region9: #{tpu_custom_call.1} parent=5 // pred_check
        _
      $region10: #{tpu_custom_call.1} parent=5 // pred_check_branch
        %138 = sbr.rel (%p135) target = $region12
      $region11: #{tpu_custom_call.1} parent=5 // pred_region
        %s139 = ssub.s32 %s15, 1
        // Predicated region
        $region13: #{tpu_custom_call.1} parent=11 // pred_check
          %p140 = pneg %p36
        $region14: #{tpu_custom_call.1} parent=11 // pred_check_branch
          %142 = sbr.rel (%p140) target = $region16
        $region15: #{tpu_custom_call.1} parent=11 // pred_region
          %s144 = ssub.s32 256, 256
          %145 = vsyncadd [#allocation4], %s144
          %s146 = sshll.u32 [#allocation3], 4
          %s147 = int_to_ptr.vmem [resolvable:$true] %s146
          %152 = dma.hbm_to_vmem [thread:$0]  %s0, 256, %s147, [#allocation4], 128, 128, 8
        $region16: #{tpu_custom_call.1} parent=11 // pred_fallthru
          _
        // Predicated region
        $region17: #{tpu_custom_call.1} parent=11 // pred_check
          %p153 = pneg %p57
        $region18: #{tpu_custom_call.1} parent=11 // pred_check_branch
          %155 = sbr.rel (%p153) target = $region20
        $region19: #{tpu_custom_call.1} parent=11 // pred_region
          %s157 = ssub.s32 1024, 1024
          %158 = vsyncadd [#allocation7], %s157
          %s159 = sshll.u32 [#allocation6], 4
          %s160 = int_to_ptr.vmem [resolvable:$true] %s159
          %165 = dma.hbm_to_vmem [thread:$0]  %s1, 1024, %s160, [#allocation7], 128, 128, 8
        $region20: #{tpu_custom_call.1} parent=11 // pred_fallthru
          _
        // Predicated region
        $region21: #{tpu_custom_call.1} parent=11 // pred_check
          %p166 = pneg %p78
        $region22: #{tpu_custom_call.1} parent=11 // pred_check_branch
          %168 = sbr.rel (%p166) target = $region24
        $region23: #{tpu_custom_call.1} parent=11 // pred_region
          %s170 = ssub.s32 1024, 1024
          %171 = vsyncadd [#allocation7], %s170
          %s172 = sshll.u32 [#allocation8], 4
          %s173 = int_to_ptr.vmem [resolvable:$true] %s172
          %178 = dma.hbm_to_vmem [thread:$0]  %s2, 1024, %s173, [#allocation7], 128, 128, 8
        $region24: #{tpu_custom_call.1} parent=11 // pred_fallthru
          _
        // Predicated region
        $region25: #{tpu_custom_call.1} parent=11 // pred_check
          %p179 = pneg %p99
        $region26: #{tpu_custom_call.1} parent=11 // pred_check_branch
          %181 = sbr.rel (%p179) target = $region28
        $region27: #{tpu_custom_call.1} parent=11 // pred_region
          _
        $region28: #{tpu_custom_call.1} parent=11 // pred_fallthru
          _
      $region12: #{tpu_custom_call.1} parent=5 // pred_fallthru
        _
      %p182 = scmp.lt.s32.totalorder %s15, 3
      // Predicated region
      $region29: #{tpu_custom_call.1} parent=5 // pred_check
        %p183 = pneg %p182
      $region30: #{tpu_custom_call.1} parent=5 // pred_check_branch
        %185 = sbr.rel (%p183) target = $region32
      $region31: #{tpu_custom_call.1} parent=5 // pred_region
        _
      $region32: #{tpu_custom_call.1} parent=5 // pred_fallthru
        _
      %p186 = scmp.le.s32.totalorder 1, %s15
      %p187 = scmp.lt.s32.totalorder %s15, 4
      %p188 = pnand %p186, %p187
      %p189 = pneg %p188
      // Predicated region
      $region33: #{tpu_custom_call.1} parent=5 // pred_check
        _
      $region34: #{tpu_custom_call.1} parent=5 // pred_check_branch
        %191 = sbr.rel (%p188) target = $region36
      $region35: #{tpu_custom_call.1} parent=5 // pred_region
        %s192 = ssub.s32 %s15, 1
        // Predicated region
        $region37: #{tpu_custom_call.1} parent=35 // pred_check
          %p193 = pneg %p36
        $region38: #{tpu_custom_call.1} parent=35 // pred_check_branch
          %195 = sbr.rel (%p193) target = $region40
        $region39: #{tpu_custom_call.1} parent=35 // pred_region
          %196 = dma.done [#allocation4], 256
        $region40: #{tpu_custom_call.1} parent=35 // pred_fallthru
          _
        // Predicated region
        $region41: #{tpu_custom_call.1} parent=35 // pred_check
          %p197 = pneg %p57
        $region42: #{tpu_custom_call.1} parent=35 // pred_check_branch
          %199 = sbr.rel (%p197) target = $region44
        $region43: #{tpu_custom_call.1} parent=35 // pred_region
          %200 = dma.done [#allocation7], 1024
        $region44: #{tpu_custom_call.1} parent=35 // pred_fallthru
          _
        // Predicated region
        $region45: #{tpu_custom_call.1} parent=35 // pred_check
          %p201 = pneg %p78
        $region46: #{tpu_custom_call.1} parent=35 // pred_check_branch
          %203 = sbr.rel (%p201) target = $region48
        $region47: #{tpu_custom_call.1} parent=35 // pred_region
          %204 = dma.done [#allocation7], 1024
        $region48: #{tpu_custom_call.1} parent=35 // pred_fallthru
          _
        %p205 = pneg %p36
        %p206 = pneg %p33
        %p207 = pneg %p57
        %p208 = pneg %p54
        %p209 = pneg %p78
        %p210 = pneg %p75
        %p211 = pneg %p99
        %p212 = pneg %p96
        %p213 = pneg %p125
        %p214 = pneg %p122
        %s215 = sand.u32 %s112, 1
        %s216 = scalar_lea.sflag [#allocation5], %s215
        %s217 = sand.u32 %s112, 1
        %s218 = smul.addr %s217, 16
        %s219 = scalar_lea.vmem [#allocation9], %s218
        %p220 = scmp.eq.s32.totalorder %s20, 0
        // Predicated region
        $region49: #{tpu_custom_call.1} parent=35 // pred_check
          %p221 = pneg %p220
        $region50: #{tpu_custom_call.1} parent=35 // pred_check_branch
          %223 = sbr.rel (%p221) target = $region52
        $region51: #{tpu_custom_call.1} parent=35 // pred_region
          %v224 = vld [vmem:[#allocation3] sm:$0xff]
          %v225 = vld [vmem:[#allocation3 + $0x8] sm:$0xff]
          %vm226 = vcmask 261120
          %227 = vst.msk [vmem:[#allocation2] sm:$0xff] %vm226, %v224
          %228 = vst.msk [vmem:[#allocation2 + $0x8] sm:$0xff] %vm226, %v225
        $region52: #{tpu_custom_call.1} parent=35 // pred_fallthru
          _
        %v229 = vld [vmem:[#allocation8] sm:$0xff]
        %v230 = vld [vmem:[#allocation8 + $0x8] sm:$0xff]
        %v231 = vld [vmem:[#allocation8 + $0x10] sm:$0xff]
        %v232 = vld [vmem:[#allocation8 + $0x18] sm:$0xff]
        %v233 = vld [vmem:[#allocation2] sm:$0xff]
        %v234 = vld [vmem:[#allocation2 + $0x8] sm:$0xff]
        %v235 = vld [vmem:[#allocation6] sm:$0xff]
        %v236 = vld [vmem:[#allocation6 + $0x8] sm:$0xff]
        %v237 = vld [vmem:[#allocation6 + $0x10] sm:$0xff]
        %v238 = vld [vmem:[#allocation6 + $0x18] sm:$0xff]
        %v239 = vld [vmem:[%s3] sm:$0x1]
        %v241 = vlaneseq
        %v242 = vshrl.u32 %v241, 7
        %v243 = vsub.s32 0, %v242
        %v244 = vrot.slane %v239, %v243
        %vm246 = vcmask 261120
        %v248 = vsel %vm246, %v233, 0
        %v251 = vsel %vm246, %v234, 0
        %253 = vmatprep.subr.mxu0 0.0
        %254 = vmatpush1.msra.mxu0 0.0
        %255 = vmatprep.subr.mxu0 0.0
        %256 = vmatpush1.msra.mxu0 0.0
        %257 = vmatprep.subr.mxu0 0.0
        %258 = vmatpush1.msra.mxu0 0.0
        %259 = vmatprep.subr.mxu0 0.0
        %260 = vmatpush1.msra.mxu0 0.0
        %261 = vmatprep.subr.mxu0 0.0
        %262 = vmatpush1.msra.mxu0 0.0
        %263 = vmatprep.subr.mxu0 0.0
        %264 = vmatpush1.msra.mxu0 0.0
        %265 = vmatprep.subr.mxu0 0.0
        %266 = vmatpush1.msra.mxu0 0.0
        %267 = vmatprep.subr.mxu0 0.0
        %268 = vmatpush1.msra.mxu0 0.0
        %269 = vmatprep.subr.mxu0 0.0
        %270 = vmatpush1.msra.mxu0 0.0
        %271 = vmatprep.subr.mxu0 0.0
        %272 = vmatpush1.msra.mxu0 0.0
        %273 = vmatprep.subr.mxu0 0.0
        %274 = vmatpush1.msra.mxu0 0.0
        %275 = vmatprep.subr.mxu0 0.0
        %276 = vmatpush1.msra.mxu0 0.0
        %277 = vmatprep.subr.mxu0 0.0
        %278 = vmatpush1.msra.mxu0 %v238
        %279 = vmatprep.subr.mxu0 0.0
        %280 = vmatpush1.msra.mxu0 %v237
        %281 = vmatprep.subr.mxu0 0.0
        %282 = vmatpush1.msra.mxu0 %v236
        %283 = vmatprep.subr.mxu0 0.0
        %284 = vmatpush1.msra.mxu0 %v235
        %285 = vmatprep.subr.mxu0 0.0
        %286 = vmatpush2.msra.mxu0 0.0
        %287 = vmatprep.subr.mxu0 0.0
        %288 = vmatpush2.msra.mxu0 0.0
        %289 = vmatprep.subr.mxu0 0.0
        %290 = vmatpush2.msra.mxu0 0.0
        %291 = vmatprep.subr.mxu0 0.0
        %292 = vmatpush2.msra.mxu0 0.0
        %293 = vmatprep.subr.mxu0 0.0
        %294 = vmatpush2.msra.mxu0 0.0
        %295 = vmatprep.subr.mxu0 0.0
        %296 = vmatpush2.msra.mxu0 0.0
        %297 = vmatprep.subr.mxu0 0.0
        %298 = vmatpush2.msra.mxu0 0.0
        %299 = vmatprep.subr.mxu0 0.0
        %300 = vmatpush2.msra.mxu0 0.0
        %301 = vmatprep.subr.mxu0 0.0
        %302 = vmatpush2.msra.mxu0 0.0
        %303 = vmatprep.subr.mxu0 0.0
        %304 = vmatpush2.msra.mxu0 0.0
        %305 = vmatprep.subr.mxu0 0.0
        %306 = vmatpush2.msra.mxu0 0.0
        %307 = vmatprep.subr.mxu0 0.0
        %308 = vmatpush2.msra.mxu0 0.0
        %309 = vmatprep.subr.mxu0 0.0
        %310 = vmatpush2.msra.mxu0 0.0
        %311 = vmatprep.subr.mxu0 0.0
        %312 = vmatpush2.msra.mxu0 0.0
        %313 = vmatprep.subr.mxu0 0.0
        %314 = vmatpush2.msra.mxu0 0.0
        %315 = vmatprep.subr.mxu0 0.0
        %316 = vmatpush2.msra.mxu0 0.0
        %317 = vmatprep.mubr.f32.mxu0 0.0
        %318 = vmatmul.mubr.f32.gmra.mxu0 %v248
        %v319 = vpop.f32.mrf.mxu0
        %v320 = vadd.f32 %v244, %v319
        %v321 = vpop.f32.mrf.mxu0
        %322 = vmatprep.mubr.f32.mxu0 0.0
        %323 = vmatmul.mubr.f32.gmra.mxu0 %v251
        %v324 = vpop.f32.mrf.mxu0
        %v325 = vadd.f32 %v244, %v324
        %v326 = vpop.f32.mrf.mxu0
        %327 = vdwg.mxu0
        %v329 = vsel %vm246, 0.0, 0
        %331 = vmatprep.subr.mxu0 0.0
        %332 = vmatpush1.msra.mxu0 0.0
        %333 = vmatprep.subr.mxu0 0.0
        %334 = vmatpush1.msra.mxu0 0.0
        %335 = vmatprep.subr.mxu0 0.0
        %336 = vmatpush1.msra.mxu0 0.0
        %337 = vmatprep.subr.mxu0 0.0
        %338 = vmatpush1.msra.mxu0 0.0
        %339 = vmatprep.subr.mxu0 0.0
        %340 = vmatpush1.msra.mxu0 0.0
        %341 = vmatprep.subr.mxu0 0.0
        %342 = vmatpush1.msra.mxu0 0.0
        %343 = vmatprep.subr.mxu0 0.0
        %344 = vmatpush1.msra.mxu0 0.0
        %345 = vmatprep.subr.mxu0 0.0
        %346 = vmatpush1.msra.mxu0 0.0
        %347 = vmatprep.subr.mxu0 0.0
        %348 = vmatpush1.msra.mxu0 0.0
        %349 = vmatprep.subr.mxu0 0.0
        %350 = vmatpush1.msra.mxu0 0.0
        %351 = vmatprep.subr.mxu0 0.0
        %352 = vmatpush1.msra.mxu0 0.0
        %353 = vmatprep.subr.mxu0 0.0
        %354 = vmatpush1.msra.mxu0 0.0
        %355 = vmatprep.subr.mxu0 0.0
        %356 = vmatpush1.msra.mxu0 %v232
        %357 = vmatprep.subr.mxu0 0.0
        %358 = vmatpush1.msra.mxu0 %v231
        %359 = vmatprep.subr.mxu0 0.0
        %360 = vmatpush1.msra.mxu0 %v230
        %361 = vmatprep.subr.mxu0 0.0
        %362 = vmatpush1.msra.mxu0 %v229
        %363 = vmatprep.subr.mxu0 0.0
        %364 = vmatpush2.msra.mxu0 0.0
        %365 = vmatprep.subr.mxu0 0.0
        %366 = vmatpush2.msra.mxu0 0.0
        %367 = vmatprep.subr.mxu0 0.0
        %368 = vmatpush2.msra.mxu0 0.0
        %369 = vmatprep.subr.mxu0 0.0
        %370 = vmatpush2.msra.mxu0 0.0
        %371 = vmatprep.subr.mxu0 0.0
        %372 = vmatpush2.msra.mxu0 0.0
        %373 = vmatprep.subr.mxu0 0.0
        %374 = vmatpush2.msra.mxu0 0.0
        %375 = vmatprep.subr.mxu0 0.0
        %376 = vmatpush2.msra.mxu0 0.0
        %377 = vmatprep.subr.mxu0 0.0
        %378 = vmatpush2.msra.mxu0 0.0
        %379 = vmatprep.subr.mxu0 0.0
        %380 = vmatpush2.msra.mxu0 0.0
        %381 = vmatprep.subr.mxu0 0.0
        %382 = vmatpush2.msra.mxu0 0.0
        %383 = vmatprep.subr.mxu0 0.0
        %384 = vmatpush2.msra.mxu0 0.0
        %385 = vmatprep.subr.mxu0 0.0
        %386 = vmatpush2.msra.mxu0 0.0
        %387 = vmatprep.subr.mxu0 0.0
        %388 = vmatpush2.msra.mxu0 0.0
        %389 = vmatprep.subr.mxu0 0.0
        %390 = vmatpush2.msra.mxu0 0.0
        %391 = vmatprep.subr.mxu0 0.0
        %392 = vmatpush2.msra.mxu0 0.0
        %393 = vmatprep.subr.mxu0 0.0
        %394 = vmatpush2.msra.mxu0 0.0
        %395 = vmatprep.mubr.f32.mxu0 0.0
        %396 = vmatmul.mubr.f32.gmra.mxu0 %v329
        %v397 = vpop.f32.mrf.mxu0
        %v398 = vadd.f32 %v320, %v397
        %v399 = vpop.f32.mrf.mxu0
        %400 = vdwg.mxu0
        %v401 = vtanh.pop %v398
        %vm402 = vcmask 254976
        %403 = vst.msk [vmem:[#allocation2] sm:$0x3] %vm402, %v401
        %v405 = vrot.slane %v320, 2
        %v408 = vsel %vm246, %v401, 0
        %410 = vmatprep.subr.mxu0 0.0
        %411 = vmatpush1.msra.mxu0 0.0
        %412 = vmatprep.subr.mxu0 0.0
        %413 = vmatpush1.msra.mxu0 0.0
        %414 = vmatprep.subr.mxu0 0.0
        %415 = vmatpush1.msra.mxu0 0.0
        %416 = vmatprep.subr.mxu0 0.0
        %417 = vmatpush1.msra.mxu0 0.0
        %418 = vmatprep.subr.mxu0 0.0
        %419 = vmatpush1.msra.mxu0 0.0
        %420 = vmatprep.subr.mxu0 0.0
        %421 = vmatpush1.msra.mxu0 0.0
        %422 = vmatprep.subr.mxu0 0.0
        %423 = vmatpush1.msra.mxu0 0.0
        %424 = vmatprep.subr.mxu0 0.0
        %425 = vmatpush1.msra.mxu0 0.0
        %426 = vmatprep.subr.mxu0 0.0
        %427 = vmatpush1.msra.mxu0 0.0
        %428 = vmatprep.subr.mxu0 0.0
        %429 = vmatpush1.msra.mxu0 0.0
        %430 = vmatprep.subr.mxu0 0.0
        %431 = vmatpush1.msra.mxu0 0.0
        %432 = vmatprep.subr.mxu0 0.0
        %433 = vmatpush1.msra.mxu0 0.0
        %434 = vmatprep.subr.mxu0 0.0
        %435 = vmatpush1.msra.mxu0 %v232
        %436 = vmatprep.subr.mxu0 0.0
        %437 = vmatpush1.msra.mxu0 %v231
        %438 = vmatprep.subr.mxu0 0.0
        %439 = vmatpush1.msra.mxu0 %v230
        %440 = vmatprep.subr.mxu0 0.0
        %441 = vmatpush1.msra.mxu0 %v229
        %442 = vmatprep.subr.mxu0 0.0
        %443 = vmatpush2.msra.mxu0 0.0
        %444 = vmatprep.subr.mxu0 0.0
        %445 = vmatpush2.msra.mxu0 0.0
        %446 = vmatprep.subr.mxu0 0.0
        %447 = vmatpush2.msra.mxu0 0.0
        %448 = vmatprep.subr.mxu0 0.0
        %449 = vmatpush2.msra.mxu0 0.0
        %450 = vmatprep.subr.mxu0 0.0
        %451 = vmatpush2.msra.mxu0 0.0
        %452 = vmatprep.subr.mxu0 0.0
        %453 = vmatpush2.msra.mxu0 0.0
        %454 = vmatprep.subr.mxu0 0.0
        %455 = vmatpush2.msra.mxu0 0.0
        %456 = vmatprep.subr.mxu0 0.0
        %457 = vmatpush2.msra.mxu0 0.0
        %458 = vmatprep.subr.mxu0 0.0
        %459 = vmatpush2.msra.mxu0 0.0
        %460 = vmatprep.subr.mxu0 0.0
        %461 = vmatpush2.msra.mxu0 0.0
        %462 = vmatprep.subr.mxu0 0.0
        %463 = vmatpush2.msra.mxu0 0.0
        %464 = vmatprep.subr.mxu0 0.0
        %465 = vmatpush2.msra.mxu0 0.0
        %466 = vmatprep.subr.mxu0 0.0
        %467 = vmatpush2.msra.mxu0 0.0
        %468 = vmatprep.subr.mxu0 0.0
        %469 = vmatpush2.msra.mxu0 0.0
        %470 = vmatprep.subr.mxu0 0.0
        %471 = vmatpush2.msra.mxu0 0.0
        %472 = vmatprep.subr.mxu0 0.0
        %473 = vmatpush2.msra.mxu0 0.0
        %474 = vmatprep.mubr.f32.mxu0 0.0
        %475 = vmatmul.mubr.f32.gmra.mxu0 %v408
        %v476 = vpop.f32.mrf.mxu0
        %v477 = vadd.f32 %v405, %v476
        %v478 = vpop.f32.mrf.mxu0
        %479 = vdwg.mxu0
        %v480 = vtanh.pop %v477
        %481 = vst.msk [vmem:[#allocation2 + $0x2] sm:$0x3] %vm402, %v480
        %v482 = vrot.slane %v320, 4
        %v485 = vsel %vm246, %v480, 0
        %487 = vmatprep.subr.mxu0 0.0
        %488 = vmatpush1.msra.mxu0 0.0
        %489 = vmatprep.subr.mxu0 0.0
        %490 = vmatpush1.msra.mxu0 0.0
        %491 = vmatprep.subr.mxu0 0.0
        %492 = vmatpush1.msra.mxu0 0.0
        %493 = vmatprep.subr.mxu0 0.0
        %494 = vmatpush1.msra.mxu0 0.0
        %495 = vmatprep.subr.mxu0 0.0
        %496 = vmatpush1.msra.mxu0 0.0
        %497 = vmatprep.subr.mxu0 0.0
        %498 = vmatpush1.msra.mxu0 0.0
        %499 = vmatprep.subr.mxu0 0.0
        %500 = vmatpush1.msra.mxu0 0.0
        %501 = vmatprep.subr.mxu0 0.0
        %502 = vmatpush1.msra.mxu0 0.0
        %503 = vmatprep.subr.mxu0 0.0
        %504 = vmatpush1.msra.mxu0 0.0
        %505 = vmatprep.subr.mxu0 0.0
        %506 = vmatpush1.msra.mxu0 0.0
        %507 = vmatprep.subr.mxu0 0.0
        %508 = vmatpush1.msra.mxu0 0.0
        %509 = vmatprep.subr.mxu0 0.0
        %510 = vmatpush1.msra.mxu0 0.0
        %511 = vmatprep.subr.mxu0 0.0
        %512 = vmatpush1.msra.mxu0 %v232
        %513 = vmatprep.subr.mxu0 0.0
        %514 = vmatpush1.msra.mxu0 %v231
        %515 = vmatprep.subr.mxu0 0.0
        %516 = vmatpush1.msra.mxu0 %v230
        %517 = vmatprep.subr.mxu0 0.0
        %518 = vmatpush1.msra.mxu0 %v229
        %519 = vmatprep.subr.mxu0 0.0
        %520 = vmatpush2.msra.mxu0 0.0
        %521 = vmatprep.subr.mxu0 0.0
        %522 = vmatpush2.msra.mxu0 0.0
        %523 = vmatprep.subr.mxu0 0.0
        %524 = vmatpush2.msra.mxu0 0.0
        %525 = vmatprep.subr.mxu0 0.0
        %526 = vmatpush2.msra.mxu0 0.0
        %527 = vmatprep.subr.mxu0 0.0
        %528 = vmatpush2.msra.mxu0 0.0
        %529 = vmatprep.subr.mxu0 0.0
        %530 = vmatpush2.msra.mxu0 0.0
        %531 = vmatprep.subr.mxu0 0.0
        %532 = vmatpush2.msra.mxu0 0.0
        %533 = vmatprep.subr.mxu0 0.0
        %534 = vmatpush2.msra.mxu0 0.0
        %535 = vmatprep.subr.mxu0 0.0
        %536 = vmatpush2.msra.mxu0 0.0
        %537 = vmatprep.subr.mxu0 0.0
        %538 = vmatpush2.msra.mxu0 0.0
        %539 = vmatprep.subr.mxu0 0.0
        %540 = vmatpush2.msra.mxu0 0.0
        %541 = vmatprep.subr.mxu0 0.0
        %542 = vmatpush2.msra.mxu0 0.0
        %543 = vmatprep.subr.mxu0 0.0
        %544 = vmatpush2.msra.mxu0 0.0
        %545 = vmatprep.subr.mxu0 0.0
        %546 = vmatpush2.msra.mxu0 0.0
        %547 = vmatprep.subr.mxu0 0.0
        %548 = vmatpush2.msra.mxu0 0.0
        %549 = vmatprep.subr.mxu0 0.0
        %550 = vmatpush2.msra.mxu0 0.0
        %551 = vmatprep.mubr.f32.mxu0 0.0
        %552 = vmatmul.mubr.f32.gmra.mxu0 %v485
        %v553 = vpop.f32.mrf.mxu0
        %v554 = vadd.f32 %v482, %v553
        %v555 = vpop.f32.mrf.mxu0
        %556 = vdwg.mxu0
        %v557 = vtanh.pop %v554
        %558 = vst.msk [vmem:[#allocation2 + $0x4] sm:$0x3] %vm402, %v557
        %v559 = vrot.slane %v320, 6
        %v562 = vsel %vm246, %v557, 0
        %564 = vmatprep.subr.mxu0 0.0
        %565 = vmatpush1.msra.mxu0 0.0
        %566 = vmatprep.subr.mxu0 0.0
        %567 = vmatpush1.msra.mxu0 0.0
        %568 = vmatprep.subr.mxu0 0.0
        %569 = vmatpush1.msra.mxu0 0.0
        %570 = vmatprep.subr.mxu0 0.0
        %571 = vmatpush1.msra.mxu0 0.0
        %572 = vmatprep.subr.mxu0 0.0
        %573 = vmatpush1.msra.mxu0 0.0
        %574 = vmatprep.subr.mxu0 0.0
        %575 = vmatpush1.msra.mxu0 0.0
        %576 = vmatprep.subr.mxu0 0.0
        %577 = vmatpush1.msra.mxu0 0.0
        %578 = vmatprep.subr.mxu0 0.0
        %579 = vmatpush1.msra.mxu0 0.0
        %580 = vmatprep.subr.mxu0 0.0
        %581 = vmatpush1.msra.mxu0 0.0
        %582 = vmatprep.subr.mxu0 0.0
        %583 = vmatpush1.msra.mxu0 0.0
        %584 = vmatprep.subr.mxu0 0.0
        %585 = vmatpush1.msra.mxu0 0.0
        %586 = vmatprep.subr.mxu0 0.0
        %587 = vmatpush1.msra.mxu0 0.0
        %588 = vmatprep.subr.mxu0 0.0
        %589 = vmatpush1.msra.mxu0 %v232
        %590 = vmatprep.subr.mxu0 0.0
        %591 = vmatpush1.msra.mxu0 %v231
        %592 = vmatprep.subr.mxu0 0.0
        %593 = vmatpush1.msra.mxu0 %v230
        %594 = vmatprep.subr.mxu0 0.0
        %595 = vmatpush1.msra.mxu0 %v229
        %596 = vmatprep.subr.mxu0 0.0
        %597 = vmatpush2.msra.mxu0 0.0
        %598 = vmatprep.subr.mxu0 0.0
        %599 = vmatpush2.msra.mxu0 0.0
        %600 = vmatprep.subr.mxu0 0.0
        %601 = vmatpush2.msra.mxu0 0.0
        %602 = vmatprep.subr.mxu0 0.0
        %603 = vmatpush2.msra.mxu0 0.0
        %604 = vmatprep.subr.mxu0 0.0
        %605 = vmatpush2.msra.mxu0 0.0
        %606 = vmatprep.subr.mxu0 0.0
        %607 = vmatpush2.msra.mxu0 0.0
        %608 = vmatprep.subr.mxu0 0.0
        %609 = vmatpush2.msra.mxu0 0.0
        %610 = vmatprep.subr.mxu0 0.0
        %611 = vmatpush2.msra.mxu0 0.0
        %612 = vmatprep.subr.mxu0 0.0
        %613 = vmatpush2.msra.mxu0 0.0
        %614 = vmatprep.subr.mxu0 0.0
        %615 = vmatpush2.msra.mxu0 0.0
        %616 = vmatprep.subr.mxu0 0.0
        %617 = vmatpush2.msra.mxu0 0.0
        %618 = vmatprep.subr.mxu0 0.0
        %619 = vmatpush2.msra.mxu0 0.0
        %620 = vmatprep.subr.mxu0 0.0
        %621 = vmatpush2.msra.mxu0 0.0
        %622 = vmatprep.subr.mxu0 0.0
        %623 = vmatpush2.msra.mxu0 0.0
        %624 = vmatprep.subr.mxu0 0.0
        %625 = vmatpush2.msra.mxu0 0.0
        %626 = vmatprep.subr.mxu0 0.0
        %627 = vmatpush2.msra.mxu0 0.0
        %628 = vmatprep.mubr.f32.mxu0 0.0
        %629 = vmatmul.mubr.f32.gmra.mxu0 %v562
        %v630 = vpop.f32.mrf.mxu0
        %v631 = vadd.f32 %v559, %v630
        %v632 = vpop.f32.mrf.mxu0
        %633 = vdwg.mxu0
        %v634 = vtanh.pop %v631
        %635 = vst.msk [vmem:[#allocation2 + $0x6] sm:$0x3] %vm402, %v634
        %v637 = vsel %vm246, %v634, 0
        %639 = vmatprep.subr.mxu0 0.0
        %640 = vmatpush1.msra.mxu0 0.0
        %641 = vmatprep.subr.mxu0 0.0
        %642 = vmatpush1.msra.mxu0 0.0
        %643 = vmatprep.subr.mxu0 0.0
        %644 = vmatpush1.msra.mxu0 0.0
        %645 = vmatprep.subr.mxu0 0.0
        %646 = vmatpush1.msra.mxu0 0.0
        %647 = vmatprep.subr.mxu0 0.0
        %648 = vmatpush1.msra.mxu0 0.0
        %649 = vmatprep.subr.mxu0 0.0
        %650 = vmatpush1.msra.mxu0 0.0
        %651 = vmatprep.subr.mxu0 0.0
        %652 = vmatpush1.msra.mxu0 0.0
        %653 = vmatprep.subr.mxu0 0.0
        %654 = vmatpush1.msra.mxu0 0.0
        %655 = vmatprep.subr.mxu0 0.0
        %656 = vmatpush1.msra.mxu0 0.0
        %657 = vmatprep.subr.mxu0 0.0
        %658 = vmatpush1.msra.mxu0 0.0
        %659 = vmatprep.subr.mxu0 0.0
        %660 = vmatpush1.msra.mxu0 0.0
        %661 = vmatprep.subr.mxu0 0.0
        %662 = vmatpush1.msra.mxu0 0.0
        %663 = vmatprep.subr.mxu0 0.0
        %664 = vmatpush1.msra.mxu0 %v232
        %665 = vmatprep.subr.mxu0 0.0
        %666 = vmatpush1.msra.mxu0 %v231
        %667 = vmatprep.subr.mxu0 0.0
        %668 = vmatpush1.msra.mxu0 %v230
        %669 = vmatprep.subr.mxu0 0.0
        %670 = vmatpush1.msra.mxu0 %v229
        %671 = vmatprep.subr.mxu0 0.0
        %672 = vmatpush2.msra.mxu0 0.0
        %673 = vmatprep.subr.mxu0 0.0
        %674 = vmatpush2.msra.mxu0 0.0
        %675 = vmatprep.subr.mxu0 0.0
        %676 = vmatpush2.msra.mxu0 0.0
        %677 = vmatprep.subr.mxu0 0.0
        %678 = vmatpush2.msra.mxu0 0.0
        %679 = vmatprep.subr.mxu0 0.0
        %680 = vmatpush2.msra.mxu0 0.0
        %681 = vmatprep.subr.mxu0 0.0
        %682 = vmatpush2.msra.mxu0 0.0
        %683 = vmatprep.subr.mxu0 0.0
        %684 = vmatpush2.msra.mxu0 0.0
        %685 = vmatprep.subr.mxu0 0.0
        %686 = vmatpush2.msra.mxu0 0.0
        %687 = vmatprep.subr.mxu0 0.0
        %688 = vmatpush2.msra.mxu0 0.0
        %689 = vmatprep.subr.mxu0 0.0
        %690 = vmatpush2.msra.mxu0 0.0
        %691 = vmatprep.subr.mxu0 0.0
        %692 = vmatpush2.msra.mxu0 0.0
        %693 = vmatprep.subr.mxu0 0.0
        %694 = vmatpush2.msra.mxu0 0.0
        %695 = vmatprep.subr.mxu0 0.0
        %696 = vmatpush2.msra.mxu0 0.0
        %697 = vmatprep.subr.mxu0 0.0
        %698 = vmatpush2.msra.mxu0 0.0
        %699 = vmatprep.subr.mxu0 0.0
        %700 = vmatpush2.msra.mxu0 0.0
        %701 = vmatprep.subr.mxu0 0.0
        %702 = vmatpush2.msra.mxu0 0.0
        %703 = vmatprep.mubr.f32.mxu0 0.0
        %704 = vmatmul.mubr.f32.gmra.mxu0 %v637
        %v705 = vpop.f32.mrf.mxu0
        %v706 = vadd.f32 %v325, %v705
        %v707 = vpop.f32.mrf.mxu0
        %708 = vdwg.mxu0
        %v709 = vtanh.pop %v706
        %710 = vst.msk [vmem:[#allocation2 + $0x8] sm:$0x3] %vm402, %v709
        %v712 = vrot.slane %v325, 2
        %v715 = vsel %vm246, %v709, 0
        %717 = vmatprep.subr.mxu0 0.0
        %718 = vmatpush1.msra.mxu0 0.0
        %719 = vmatprep.subr.mxu0 0.0
        %720 = vmatpush1.msra.mxu0 0.0
        %721 = vmatprep.subr.mxu0 0.0
        %722 = vmatpush1.msra.mxu0 0.0
        %723 = vmatprep.subr.mxu0 0.0
        %724 = vmatpush1.msra.mxu0 0.0
        %725 = vmatprep.subr.mxu0 0.0
        %726 = vmatpush1.msra.mxu0 0.0
        %727 = vmatprep.subr.mxu0 0.0
        %728 = vmatpush1.msra.mxu0 0.0
        %729 = vmatprep.subr.mxu0 0.0
        %730 = vmatpush1.msra.mxu0 0.0
        %731 = vmatprep.subr.mxu0 0.0
        %732 = vmatpush1.msra.mxu0 0.0
        %733 = vmatprep.subr.mxu0 0.0
        %734 = vmatpush1.msra.mxu0 0.0
        %735 = vmatprep.subr.mxu0 0.0
        %736 = vmatpush1.msra.mxu0 0.0
        %737 = vmatprep.subr.mxu0 0.0
        %738 = vmatpush1.msra.mxu0 0.0
        %739 = vmatprep.subr.mxu0 0.0
        %740 = vmatpush1.msra.mxu0 0.0
        %741 = vmatprep.subr.mxu0 0.0
        %742 = vmatpush1.msra.mxu0 %v232
        %743 = vmatprep.subr.mxu0 0.0
        %744 = vmatpush1.msra.mxu0 %v231
        %745 = vmatprep.subr.mxu0 0.0
        %746 = vmatpush1.msra.mxu0 %v230
        %747 = vmatprep.subr.mxu0 0.0
        %748 = vmatpush1.msra.mxu0 %v229
        %749 = vmatprep.subr.mxu0 0.0
        %750 = vmatpush2.msra.mxu0 0.0
        %751 = vmatprep.subr.mxu0 0.0
        %752 = vmatpush2.msra.mxu0 0.0
        %753 = vmatprep.subr.mxu0 0.0
        %754 = vmatpush2.msra.mxu0 0.0
        %755 = vmatprep.subr.mxu0 0.0
        %756 = vmatpush2.msra.mxu0 0.0
        %757 = vmatprep.subr.mxu0 0.0
        %758 = vmatpush2.msra.mxu0 0.0
        %759 = vmatprep.subr.mxu0 0.0
        %760 = vmatpush2.msra.mxu0 0.0
        %761 = vmatprep.subr.mxu0 0.0
        %762 = vmatpush2.msra.mxu0 0.0
        %763 = vmatprep.subr.mxu0 0.0
        %764 = vmatpush2.msra.mxu0 0.0
        %765 = vmatprep.subr.mxu0 0.0
        %766 = vmatpush2.msra.mxu0 0.0
        %767 = vmatprep.subr.mxu0 0.0
        %768 = vmatpush2.msra.mxu0 0.0
        %769 = vmatprep.subr.mxu0 0.0
        %770 = vmatpush2.msra.mxu0 0.0
        %771 = vmatprep.subr.mxu0 0.0
        %772 = vmatpush2.msra.mxu0 0.0
        %773 = vmatprep.subr.mxu0 0.0
        %774 = vmatpush2.msra.mxu0 0.0
        %775 = vmatprep.subr.mxu0 0.0
        %776 = vmatpush2.msra.mxu0 0.0
        %777 = vmatprep.subr.mxu0 0.0
        %778 = vmatpush2.msra.mxu0 0.0
        %779 = vmatprep.subr.mxu0 0.0
        %780 = vmatpush2.msra.mxu0 0.0
        %781 = vmatprep.mubr.f32.mxu0 0.0
        %782 = vmatmul.mubr.f32.gmra.mxu0 %v715
        %v783 = vpop.f32.mrf.mxu0
        %v784 = vadd.f32 %v712, %v783
        %v785 = vpop.f32.mrf.mxu0
        %786 = vdwg.mxu0
        %v787 = vtanh.pop %v784
        %788 = vst.msk [vmem:[#allocation2 + $0xa] sm:$0x3] %vm402, %v787
        %v789 = vrot.slane %v325, 4
        %v792 = vsel %vm246, %v787, 0
        %794 = vmatprep.subr.mxu0 0.0
        %795 = vmatpush1.msra.mxu0 0.0
        %796 = vmatprep.subr.mxu0 0.0
        %797 = vmatpush1.msra.mxu0 0.0
        %798 = vmatprep.subr.mxu0 0.0
        %799 = vmatpush1.msra.mxu0 0.0
        %800 = vmatprep.subr.mxu0 0.0
        %801 = vmatpush1.msra.mxu0 0.0
        %802 = vmatprep.subr.mxu0 0.0
        %803 = vmatpush1.msra.mxu0 0.0
        %804 = vmatprep.subr.mxu0 0.0
        %805 = vmatpush1.msra.mxu0 0.0
        %806 = vmatprep.subr.mxu0 0.0
        %807 = vmatpush1.msra.mxu0 0.0
        %808 = vmatprep.subr.mxu0 0.0
        %809 = vmatpush1.msra.mxu0 0.0
        %810 = vmatprep.subr.mxu0 0.0
        %811 = vmatpush1.msra.mxu0 0.0
        %812 = vmatprep.subr.mxu0 0.0
        %813 = vmatpush1.msra.mxu0 0.0
        %814 = vmatprep.subr.mxu0 0.0
        %815 = vmatpush1.msra.mxu0 0.0
        %816 = vmatprep.subr.mxu0 0.0
        %817 = vmatpush1.msra.mxu0 0.0
        %818 = vmatprep.subr.mxu0 0.0
        %819 = vmatpush1.msra.mxu0 %v232
        %820 = vmatprep.subr.mxu0 0.0
        %821 = vmatpush1.msra.mxu0 %v231
        %822 = vmatprep.subr.mxu0 0.0
        %823 = vmatpush1.msra.mxu0 %v230
        %824 = vmatprep.subr.mxu0 0.0
        %825 = vmatpush1.msra.mxu0 %v229
        %826 = vmatprep.subr.mxu0 0.0
        %827 = vmatpush2.msra.mxu0 0.0
        %828 = vmatprep.subr.mxu0 0.0
        %829 = vmatpush2.msra.mxu0 0.0
        %830 = vmatprep.subr.mxu0 0.0
        %831 = vmatpush2.msra.mxu0 0.0
        %832 = vmatprep.subr.mxu0 0.0
        %833 = vmatpush2.msra.mxu0 0.0
        %834 = vmatprep.subr.mxu0 0.0
        %835 = vmatpush2.msra.mxu0 0.0
        %836 = vmatprep.subr.mxu0 0.0
        %837 = vmatpush2.msra.mxu0 0.0
        %838 = vmatprep.subr.mxu0 0.0
        %839 = vmatpush2.msra.mxu0 0.0
        %840 = vmatprep.subr.mxu0 0.0
        %841 = vmatpush2.msra.mxu0 0.0
        %842 = vmatprep.subr.mxu0 0.0
        %843 = vmatpush2.msra.mxu0 0.0
        %844 = vmatprep.subr.mxu0 0.0
        %845 = vmatpush2.msra.mxu0 0.0
        %846 = vmatprep.subr.mxu0 0.0
        %847 = vmatpush2.msra.mxu0 0.0
        %848 = vmatprep.subr.mxu0 0.0
        %849 = vmatpush2.msra.mxu0 0.0
        %850 = vmatprep.subr.mxu0 0.0
        %851 = vmatpush2.msra.mxu0 0.0
        %852 = vmatprep.subr.mxu0 0.0
        %853 = vmatpush2.msra.mxu0 0.0
        %854 = vmatprep.subr.mxu0 0.0
        %855 = vmatpush2.msra.mxu0 0.0
        %856 = vmatprep.subr.mxu0 0.0
        %857 = vmatpush2.msra.mxu0 0.0
        %858 = vmatprep.mubr.f32.mxu0 0.0
        %859 = vmatmul.mubr.f32.gmra.mxu0 %v792
        %v860 = vpop.f32.mrf.mxu0
        %v861 = vadd.f32 %v789, %v860
        %v862 = vpop.f32.mrf.mxu0
        %863 = vdwg.mxu0
        %v864 = vtanh.pop %v861
        %865 = vst.msk [vmem:[#allocation2 + $0xc] sm:$0x3] %vm402, %v864
        %v866 = vrot.slane %v325, 6
        %v869 = vsel %vm246, %v864, 0
        %871 = vmatprep.subr.mxu0 0.0
        %872 = vmatpush1.msra.mxu0 0.0
        %873 = vmatprep.subr.mxu0 0.0
        %874 = vmatpush1.msra.mxu0 0.0
        %875 = vmatprep.subr.mxu0 0.0
        %876 = vmatpush1.msra.mxu0 0.0
        %877 = vmatprep.subr.mxu0 0.0
        %878 = vmatpush1.msra.mxu0 0.0
        %879 = vmatprep.subr.mxu0 0.0
        %880 = vmatpush1.msra.mxu0 0.0
        %881 = vmatprep.subr.mxu0 0.0
        %882 = vmatpush1.msra.mxu0 0.0
        %883 = vmatprep.subr.mxu0 0.0
        %884 = vmatpush1.msra.mxu0 0.0
        %885 = vmatprep.subr.mxu0 0.0
        %886 = vmatpush1.msra.mxu0 0.0
        %887 = vmatprep.subr.mxu0 0.0
        %888 = vmatpush1.msra.mxu0 0.0
        %889 = vmatprep.subr.mxu0 0.0
        %890 = vmatpush1.msra.mxu0 0.0
        %891 = vmatprep.subr.mxu0 0.0
        %892 = vmatpush1.msra.mxu0 0.0
        %893 = vmatprep.subr.mxu0 0.0
        %894 = vmatpush1.msra.mxu0 0.0
        %895 = vmatprep.subr.mxu0 0.0
        %896 = vmatpush1.msra.mxu0 %v232
        %897 = vmatprep.subr.mxu0 0.0
        %898 = vmatpush1.msra.mxu0 %v231
        %899 = vmatprep.subr.mxu0 0.0
        %900 = vmatpush1.msra.mxu0 %v230
        %901 = vmatprep.subr.mxu0 0.0
        %902 = vmatpush1.msra.mxu0 %v229
        %903 = vmatprep.subr.mxu0 0.0
        %904 = vmatpush2.msra.mxu0 0.0
        %905 = vmatprep.subr.mxu0 0.0
        %906 = vmatpush2.msra.mxu0 0.0
        %907 = vmatprep.subr.mxu0 0.0
        %908 = vmatpush2.msra.mxu0 0.0
        %909 = vmatprep.subr.mxu0 0.0
        %910 = vmatpush2.msra.mxu0 0.0
        %911 = vmatprep.subr.mxu0 0.0
        %912 = vmatpush2.msra.mxu0 0.0
        %913 = vmatprep.subr.mxu0 0.0
        %914 = vmatpush2.msra.mxu0 0.0
        %915 = vmatprep.subr.mxu0 0.0
        %916 = vmatpush2.msra.mxu0 0.0
        %917 = vmatprep.subr.mxu0 0.0
        %918 = vmatpush2.msra.mxu0 0.0
        %919 = vmatprep.subr.mxu0 0.0
        %920 = vmatpush2.msra.mxu0 0.0
        %921 = vmatprep.subr.mxu0 0.0
        %922 = vmatpush2.msra.mxu0 0.0
        %923 = vmatprep.subr.mxu0 0.0
        %924 = vmatpush2.msra.mxu0 0.0
        %925 = vmatprep.subr.mxu0 0.0
        %926 = vmatpush2.msra.mxu0 0.0
        %927 = vmatprep.subr.mxu0 0.0
        %928 = vmatpush2.msra.mxu0 0.0
        %929 = vmatprep.subr.mxu0 0.0
        %930 = vmatpush2.msra.mxu0 0.0
        %931 = vmatprep.subr.mxu0 0.0
        %932 = vmatpush2.msra.mxu0 0.0
        %933 = vmatprep.subr.mxu0 0.0
        %934 = vmatpush2.msra.mxu0 0.0
        %935 = vmatprep.mubr.f32.mxu0 0.0
        %936 = vmatmul.mubr.f32.gmra.mxu0 %v869
        %v937 = vpop.f32.mrf.mxu0
        %v938 = vadd.f32 %v866, %v937
        %v939 = vpop.f32.mrf.mxu0
        %940 = vdwg.mxu0
        %v941 = vtanh.pop %v938
        %942 = vst.msk [vmem:[#allocation2 + $0xe] sm:$0x3] %vm402, %v941
        %s943 = scalar_lea.vmem [#allocation8], 32
        %v944 = vld [vmem:[%s943] sm:$0xff]
        %v945 = vld [vmem:[%s943 + $0x8] sm:$0xff]
        %v946 = vld [vmem:[%s943 + $0x10] sm:$0xff]
        %v947 = vld [vmem:[%s943 + $0x18] sm:$0xff]
        %v948 = vld [vmem:[#allocation2] sm:$0xff]
        %v949 = vld [vmem:[#allocation2 + $0x8] sm:$0xff]
        %s950 = scalar_lea.vmem [#allocation6], 32
        %v951 = vld [vmem:[%s950] sm:$0xff]
        %v952 = vld [vmem:[%s950 + $0x8] sm:$0xff]
        %v953 = vld [vmem:[%s950 + $0x10] sm:$0xff]
        %v954 = vld [vmem:[%s950 + $0x18] sm:$0xff]
        %s955 = scalar_lea.vmem %s3, 1
        %v956 = vld [vmem:[%s955] sm:$0x1]
        %v958 = vlaneseq
        %v959 = vshrl.u32 %v958, 7
        %v960 = vsub.s32 0, %v959
        %v961 = vrot.slane %v956, %v960
        %v964 = vsel %vm246, %v948, 0
        %v967 = vsel %vm246, %v949, 0
        %969 = vmatprep.subr.mxu0 0.0
        %970 = vmatpush1.msra.mxu0 0.0
        %971 = vmatprep.subr.mxu0 0.0
        %972 = vmatpush1.msra.mxu0 0.0
        %973 = vmatprep.subr.mxu0 0.0
        %974 = vmatpush1.msra.mxu0 0.0
        %975 = vmatprep.subr.mxu0 0.0
        %976 = vmatpush1.msra.mxu0 0.0
        %977 = vmatprep.subr.mxu0 0.0
        %978 = vmatpush1.msra.mxu0 0.0
        %979 = vmatprep.subr.mxu0 0.0
        %980 = vmatpush1.msra.mxu0 0.0
        %981 = vmatprep.subr.mxu0 0.0
        %982 = vmatpush1.msra.mxu0 0.0
        %983 = vmatprep.subr.mxu0 0.0
        %984 = vmatpush1.msra.mxu0 0.0
        %985 = vmatprep.subr.mxu0 0.0
        %986 = vmatpush1.msra.mxu0 0.0
        %987 = vmatprep.subr.mxu0 0.0
        %988 = vmatpush1.msra.mxu0 0.0
        %989 = vmatprep.subr.mxu0 0.0
        %990 = vmatpush1.msra.mxu0 0.0
        %991 = vmatprep.subr.mxu0 0.0
        %992 = vmatpush1.msra.mxu0 0.0
        %993 = vmatprep.subr.mxu0 0.0
        %994 = vmatpush1.msra.mxu0 %v954
        %995 = vmatprep.subr.mxu0 0.0
        %996 = vmatpush1.msra.mxu0 %v953
        %997 = vmatprep.subr.mxu0 0.0
        %998 = vmatpush1.msra.mxu0 %v952
        %999 = vmatprep.subr.mxu0 0.0
        %1000 = vmatpush1.msra.mxu0 %v951
        %1001 = vmatprep.subr.mxu0 0.0
        %1002 = vmatpush2.msra.mxu0 0.0
        %1003 = vmatprep.subr.mxu0 0.0
        %1004 = vmatpush2.msra.mxu0 0.0
        %1005 = vmatprep.subr.mxu0 0.0
        %1006 = vmatpush2.msra.mxu0 0.0
        %1007 = vmatprep.subr.mxu0 0.0
        %1008 = vmatpush2.msra.mxu0 0.0
        %1009 = vmatprep.subr.mxu0 0.0
        %1010 = vmatpush2.msra.mxu0 0.0
        %1011 = vmatprep.subr.mxu0 0.0
        %1012 = vmatpush2.msra.mxu0 0.0
        %1013 = vmatprep.subr.mxu0 0.0
        %1014 = vmatpush2.msra.mxu0 0.0
        %1015 = vmatprep.subr.mxu0 0.0
        %1016 = vmatpush2.msra.mxu0 0.0
        %1017 = vmatprep.subr.mxu0 0.0
        %1018 = vmatpush2.msra.mxu0 0.0
        %1019 = vmatprep.subr.mxu0 0.0
        %1020 = vmatpush2.msra.mxu0 0.0
        %1021 = vmatprep.subr.mxu0 0.0
        %1022 = vmatpush2.msra.mxu0 0.0
        %1023 = vmatprep.subr.mxu0 0.0
        %1024 = vmatpush2.msra.mxu0 0.0
        %1025 = vmatprep.subr.mxu0 0.0
        %1026 = vmatpush2.msra.mxu0 0.0
        %1027 = vmatprep.subr.mxu0 0.0
        %1028 = vmatpush2.msra.mxu0 0.0
        %1029 = vmatprep.subr.mxu0 0.0
        %1030 = vmatpush2.msra.mxu0 0.0
        %1031 = vmatprep.subr.mxu0 0.0
        %1032 = vmatpush2.msra.mxu0 0.0
        %1033 = vmatprep.mubr.f32.mxu0 0.0
        %1034 = vmatmul.mubr.f32.gmra.mxu0 %v964
        %v1035 = vpop.f32.mrf.mxu0
        %v1036 = vadd.f32 %v961, %v1035
        %v1037 = vpop.f32.mrf.mxu0
        %1038 = vmatprep.mubr.f32.mxu0 0.0
        %1039 = vmatmul.mubr.f32.gmra.mxu0 %v967
        %v1040 = vpop.f32.mrf.mxu0
        %v1041 = vadd.f32 %v961, %v1040
        %v1042 = vpop.f32.mrf.mxu0
        %1043 = vdwg.mxu0
        %1044 = vmatprep.subr.mxu0 0.0
        %1045 = vmatpush1.msra.mxu0 0.0
        %1046 = vmatprep.subr.mxu0 0.0
        %1047 = vmatpush1.msra.mxu0 0.0
        %1048 = vmatprep.subr.mxu0 0.0
        %1049 = vmatpush1.msra.mxu0 0.0
        %1050 = vmatprep.subr.mxu0 0.0
        %1051 = vmatpush1.msra.mxu0 0.0
        %1052 = vmatprep.subr.mxu0 0.0
        %1053 = vmatpush1.msra.mxu0 0.0
        %1054 = vmatprep.subr.mxu0 0.0
        %1055 = vmatpush1.msra.mxu0 0.0
        %1056 = vmatprep.subr.mxu0 0.0
        %1057 = vmatpush1.msra.mxu0 0.0
        %1058 = vmatprep.subr.mxu0 0.0
        %1059 = vmatpush1.msra.mxu0 0.0
        %1060 = vmatprep.subr.mxu0 0.0
        %1061 = vmatpush1.msra.mxu0 0.0
        %1062 = vmatprep.subr.mxu0 0.0
        %1063 = vmatpush1.msra.mxu0 0.0
        %1064 = vmatprep.subr.mxu0 0.0
        %1065 = vmatpush1.msra.mxu0 0.0
        %1066 = vmatprep.subr.mxu0 0.0
        %1067 = vmatpush1.msra.mxu0 0.0
        %1068 = vmatprep.subr.mxu0 0.0
        %1069 = vmatpush1.msra.mxu0 %v947
        %1070 = vmatprep.subr.mxu0 0.0
        %1071 = vmatpush1.msra.mxu0 %v946
        %1072 = vmatprep.subr.mxu0 0.0
        %1073 = vmatpush1.msra.mxu0 %v945
        %1074 = vmatprep.subr.mxu0 0.0
        %1075 = vmatpush1.msra.mxu0 %v944
        %1076 = vmatprep.subr.mxu0 0.0
        %1077 = vmatpush2.msra.mxu0 0.0
        %1078 = vmatprep.subr.mxu0 0.0
        %1079 = vmatpush2.msra.mxu0 0.0
        %1080 = vmatprep.subr.mxu0 0.0
        %1081 = vmatpush2.msra.mxu0 0.0
        %1082 = vmatprep.subr.mxu0 0.0
        %1083 = vmatpush2.msra.mxu0 0.0
        %1084 = vmatprep.subr.mxu0 0.0
        %1085 = vmatpush2.msra.mxu0 0.0
        %1086 = vmatprep.subr.mxu0 0.0
        %1087 = vmatpush2.msra.mxu0 0.0
        %1088 = vmatprep.subr.mxu0 0.0
        %1089 = vmatpush2.msra.mxu0 0.0
        %1090 = vmatprep.subr.mxu0 0.0
        %1091 = vmatpush2.msra.mxu0 0.0
        %1092 = vmatprep.subr.mxu0 0.0
        %1093 = vmatpush2.msra.mxu0 0.0
        %1094 = vmatprep.subr.mxu0 0.0
        %1095 = vmatpush2.msra.mxu0 0.0
        %1096 = vmatprep.subr.mxu0 0.0
        %1097 = vmatpush2.msra.mxu0 0.0
        %1098 = vmatprep.subr.mxu0 0.0
        %1099 = vmatpush2.msra.mxu0 0.0
        %1100 = vmatprep.subr.mxu0 0.0
        %1101 = vmatpush2.msra.mxu0 0.0
        %1102 = vmatprep.subr.mxu0 0.0
        %1103 = vmatpush2.msra.mxu0 0.0
        %1104 = vmatprep.subr.mxu0 0.0
        %1105 = vmatpush2.msra.mxu0 0.0
        %1106 = vmatprep.subr.mxu0 0.0
        %1107 = vmatpush2.msra.mxu0 0.0
        %1108 = vmatprep.mubr.f32.mxu0 0.0
        %1109 = vmatmul.mubr.f32.gmra.mxu0 %v329
        %v1110 = vpop.f32.mrf.mxu0
        %v1111 = vadd.f32 %v1036, %v1110
        %v1112 = vpop.f32.mrf.mxu0
        %1113 = vdwg.mxu0
        %v1114 = vtanh.pop %v1111
        %1115 = vst.msk [vmem:[#allocation2] sm:$0x3] %vm402, %v1114
        %v1117 = vrot.slane %v1036, 2
        %v1120 = vsel %vm246, %v1114, 0
        %1122 = vmatprep.subr.mxu0 0.0
        %1123 = vmatpush1.msra.mxu0 0.0
        %1124 = vmatprep.subr.mxu0 0.0
        %1125 = vmatpush1.msra.mxu0 0.0
        %1126 = vmatprep.subr.mxu0 0.0
        %1127 = vmatpush1.msra.mxu0 0.0
        %1128 = vmatprep.subr.mxu0 0.0
        %1129 = vmatpush1.msra.mxu0 0.0
        %1130 = vmatprep.subr.mxu0 0.0
        %1131 = vmatpush1.msra.mxu0 0.0
        %1132 = vmatprep.subr.mxu0 0.0
        %1133 = vmatpush1.msra.mxu0 0.0
        %1134 = vmatprep.subr.mxu0 0.0
        %1135 = vmatpush1.msra.mxu0 0.0
        %1136 = vmatprep.subr.mxu0 0.0
        %1137 = vmatpush1.msra.mxu0 0.0
        %1138 = vmatprep.subr.mxu0 0.0
        %1139 = vmatpush1.msra.mxu0 0.0
        %1140 = vmatprep.subr.mxu0 0.0
        %1141 = vmatpush1.msra.mxu0 0.0
        %1142 = vmatprep.subr.mxu0 0.0
        %1143 = vmatpush1.msra.mxu0 0.0
        %1144 = vmatprep.subr.mxu0 0.0
        %1145 = vmatpush1.msra.mxu0 0.0
        %1146 = vmatprep.subr.mxu0 0.0
        %1147 = vmatpush1.msra.mxu0 %v947
        %1148 = vmatprep.subr.mxu0 0.0
        %1149 = vmatpush1.msra.mxu0 %v946
        %1150 = vmatprep.subr.mxu0 0.0
        %1151 = vmatpush1.msra.mxu0 %v945
        %1152 = vmatprep.subr.mxu0 0.0
        %1153 = vmatpush1.msra.mxu0 %v944
        %1154 = vmatprep.subr.mxu0 0.0
        %1155 = vmatpush2.msra.mxu0 0.0
        %1156 = vmatprep.subr.mxu0 0.0
        %1157 = vmatpush2.msra.mxu0 0.0
        %1158 = vmatprep.subr.mxu0 0.0
        %1159 = vmatpush2.msra.mxu0 0.0
        %1160 = vmatprep.subr.mxu0 0.0
        %1161 = vmatpush2.msra.mxu0 0.0
        %1162 = vmatprep.subr.mxu0 0.0
        %1163 = vmatpush2.msra.mxu0 0.0
        %1164 = vmatprep.subr.mxu0 0.0
        %1165 = vmatpush2.msra.mxu0 0.0
        %1166 = vmatprep.subr.mxu0 0.0
        %1167 = vmatpush2.msra.mxu0 0.0
        %1168 = vmatprep.subr.mxu0 0.0
        %1169 = vmatpush2.msra.mxu0 0.0
        %1170 = vmatprep.subr.mxu0 0.0
        %1171 = vmatpush2.msra.mxu0 0.0
        %1172 = vmatprep.subr.mxu0 0.0
        %1173 = vmatpush2.msra.mxu0 0.0
        %1174 = vmatprep.subr.mxu0 0.0
        %1175 = vmatpush2.msra.mxu0 0.0
        %1176 = vmatprep.subr.mxu0 0.0
        %1177 = vmatpush2.msra.mxu0 0.0
        %1178 = vmatprep.subr.mxu0 0.0
        %1179 = vmatpush2.msra.mxu0 0.0
        %1180 = vmatprep.subr.mxu0 0.0
        %1181 = vmatpush2.msra.mxu0 0.0
        %1182 = vmatprep.subr.mxu0 0.0
        %1183 = vmatpush2.msra.mxu0 0.0
        %1184 = vmatprep.subr.mxu0 0.0
        %1185 = vmatpush2.msra.mxu0 0.0
        %1186 = vmatprep.mubr.f32.mxu0 0.0
        %1187 = vmatmul.mubr.f32.gmra.mxu0 %v1120
        %v1188 = vpop.f32.mrf.mxu0
        %v1189 = vadd.f32 %v1117, %v1188
        %v1190 = vpop.f32.mrf.mxu0
        %1191 = vdwg.mxu0
        %v1192 = vtanh.pop %v1189
        %1193 = vst.msk [vmem:[#allocation2 + $0x2] sm:$0x3] %vm402, %v1192
        %v1194 = vrot.slane %v1036, 4
        %v1197 = vsel %vm246, %v1192, 0
        %1199 = vmatprep.subr.mxu0 0.0
        %1200 = vmatpush1.msra.mxu0 0.0
        %1201 = vmatprep.subr.mxu0 0.0
        %1202 = vmatpush1.msra.mxu0 0.0
        %1203 = vmatprep.subr.mxu0 0.0
        %1204 = vmatpush1.msra.mxu0 0.0
        %1205 = vmatprep.subr.mxu0 0.0
        %1206 = vmatpush1.msra.mxu0 0.0
        %1207 = vmatprep.subr.mxu0 0.0
        %1208 = vmatpush1.msra.mxu0 0.0
        %1209 = vmatprep.subr.mxu0 0.0
        %1210 = vmatpush1.msra.mxu0 0.0
        %1211 = vmatprep.subr.mxu0 0.0
        %1212 = vmatpush1.msra.mxu0 0.0
        %1213 = vmatprep.subr.mxu0 0.0
        %1214 = vmatpush1.msra.mxu0 0.0
        %1215 = vmatprep.subr.mxu0 0.0
        %1216 = vmatpush1.msra.mxu0 0.0
        %1217 = vmatprep.subr.mxu0 0.0
        %1218 = vmatpush1.msra.mxu0 0.0
        %1219 = vmatprep.subr.mxu0 0.0
        %1220 = vmatpush1.msra.mxu0 0.0
        %1221 = vmatprep.subr.mxu0 0.0
        %1222 = vmatpush1.msra.mxu0 0.0
        %1223 = vmatprep.subr.mxu0 0.0
        %1224 = vmatpush1.msra.mxu0 %v947
        %1225 = vmatprep.subr.mxu0 0.0
        %1226 = vmatpush1.msra.mxu0 %v946
        %1227 = vmatprep.subr.mxu0 0.0
        %1228 = vmatpush1.msra.mxu0 %v945
        %1229 = vmatprep.subr.mxu0 0.0
        %1230 = vmatpush1.msra.mxu0 %v944
        %1231 = vmatprep.subr.mxu0 0.0
        %1232 = vmatpush2.msra.mxu0 0.0
        %1233 = vmatprep.subr.mxu0 0.0
        %1234 = vmatpush2.msra.mxu0 0.0
        %1235 = vmatprep.subr.mxu0 0.0
        %1236 = vmatpush2.msra.mxu0 0.0
        %1237 = vmatprep.subr.mxu0 0.0
        %1238 = vmatpush2.msra.mxu0 0.0
        %1239 = vmatprep.subr.mxu0 0.0
        %1240 = vmatpush2.msra.mxu0 0.0
        %1241 = vmatprep.subr.mxu0 0.0
        %1242 = vmatpush2.msra.mxu0 0.0
        %1243 = vmatprep.subr.mxu0 0.0
        %1244 = vmatpush2.msra.mxu0 0.0
        %1245 = vmatprep.subr.mxu0 0.0
        %1246 = vmatpush2.msra.mxu0 0.0
        %1247 = vmatprep.subr.mxu0 0.0
        %1248 = vmatpush2.msra.mxu0 0.0
        %1249 = vmatprep.subr.mxu0 0.0
        %1250 = vmatpush2.msra.mxu0 0.0
        %1251 = vmatprep.subr.mxu0 0.0
        %1252 = vmatpush2.msra.mxu0 0.0
        %1253 = vmatprep.subr.mxu0 0.0
        %1254 = vmatpush2.msra.mxu0 0.0
        %1255 = vmatprep.subr.mxu0 0.0
        %1256 = vmatpush2.msra.mxu0 0.0
        %1257 = vmatprep.subr.mxu0 0.0
        %1258 = vmatpush2.msra.mxu0 0.0
        %1259 = vmatprep.subr.mxu0 0.0
        %1260 = vmatpush2.msra.mxu0 0.0
        %1261 = vmatprep.subr.mxu0 0.0
        %1262 = vmatpush2.msra.mxu0 0.0
        %1263 = vmatprep.mubr.f32.mxu0 0.0
        %1264 = vmatmul.mubr.f32.gmra.mxu0 %v1197
        %v1265 = vpop.f32.mrf.mxu0
        %v1266 = vadd.f32 %v1194, %v1265
        %v1267 = vpop.f32.mrf.mxu0
        %1268 = vdwg.mxu0
        %v1269 = vtanh.pop %v1266
        %1270 = vst.msk [vmem:[#allocation2 + $0x4] sm:$0x3] %vm402, %v1269
        %v1271 = vrot.slane %v1036, 6
        %v1274 = vsel %vm246, %v1269, 0
        %1276 = vmatprep.subr.mxu0 0.0
        %1277 = vmatpush1.msra.mxu0 0.0
        %1278 = vmatprep.subr.mxu0 0.0
        %1279 = vmatpush1.msra.mxu0 0.0
        %1280 = vmatprep.subr.mxu0 0.0
        %1281 = vmatpush1.msra.mxu0 0.0
        %1282 = vmatprep.subr.mxu0 0.0
        %1283 = vmatpush1.msra.mxu0 0.0
        %1284 = vmatprep.subr.mxu0 0.0
        %1285 = vmatpush1.msra.mxu0 0.0
        %1286 = vmatprep.subr.mxu0 0.0
        %1287 = vmatpush1.msra.mxu0 0.0
        %1288 = vmatprep.subr.mxu0 0.0
        %1289 = vmatpush1.msra.mxu0 0.0
        %1290 = vmatprep.subr.mxu0 0.0
        %1291 = vmatpush1.msra.mxu0 0.0
        %1292 = vmatprep.subr.mxu0 0.0
        %1293 = vmatpush1.msra.mxu0 0.0
        %1294 = vmatprep.subr.mxu0 0.0
        %1295 = vmatpush1.msra.mxu0 0.0
        %1296 = vmatprep.subr.mxu0 0.0
        %1297 = vmatpush1.msra.mxu0 0.0
        %1298 = vmatprep.subr.mxu0 0.0
        %1299 = vmatpush1.msra.mxu0 0.0
        %1300 = vmatprep.subr.mxu0 0.0
        %1301 = vmatpush1.msra.mxu0 %v947
        %1302 = vmatprep.subr.mxu0 0.0
        %1303 = vmatpush1.msra.mxu0 %v946
        %1304 = vmatprep.subr.mxu0 0.0
        %1305 = vmatpush1.msra.mxu0 %v945
        %1306 = vmatprep.subr.mxu0 0.0
        %1307 = vmatpush1.msra.mxu0 %v944
        %1308 = vmatprep.subr.mxu0 0.0
        %1309 = vmatpush2.msra.mxu0 0.0
        %1310 = vmatprep.subr.mxu0 0.0
        %1311 = vmatpush2.msra.mxu0 0.0
        %1312 = vmatprep.subr.mxu0 0.0
        %1313 = vmatpush2.msra.mxu0 0.0
        %1314 = vmatprep.subr.mxu0 0.0
        %1315 = vmatpush2.msra.mxu0 0.0
        %1316 = vmatprep.subr.mxu0 0.0
        %1317 = vmatpush2.msra.mxu0 0.0
        %1318 = vmatprep.subr.mxu0 0.0
        %1319 = vmatpush2.msra.mxu0 0.0
        %1320 = vmatprep.subr.mxu0 0.0
        %1321 = vmatpush2.msra.mxu0 0.0
        %1322 = vmatprep.subr.mxu0 0.0
        %1323 = vmatpush2.msra.mxu0 0.0
        %1324 = vmatprep.subr.mxu0 0.0
        %1325 = vmatpush2.msra.mxu0 0.0
        %1326 = vmatprep.subr.mxu0 0.0
        %1327 = vmatpush2.msra.mxu0 0.0
        %1328 = vmatprep.subr.mxu0 0.0
        %1329 = vmatpush2.msra.mxu0 0.0
        %1330 = vmatprep.subr.mxu0 0.0
        %1331 = vmatpush2.msra.mxu0 0.0
        %1332 = vmatprep.subr.mxu0 0.0
        %1333 = vmatpush2.msra.mxu0 0.0
        %1334 = vmatprep.subr.mxu0 0.0
        %1335 = vmatpush2.msra.mxu0 0.0
        %1336 = vmatprep.subr.mxu0 0.0
        %1337 = vmatpush2.msra.mxu0 0.0
        %1338 = vmatprep.subr.mxu0 0.0
        %1339 = vmatpush2.msra.mxu0 0.0
        %1340 = vmatprep.mubr.f32.mxu0 0.0
        %1341 = vmatmul.mubr.f32.gmra.mxu0 %v1274
        %v1342 = vpop.f32.mrf.mxu0
        %v1343 = vadd.f32 %v1271, %v1342
        %v1344 = vpop.f32.mrf.mxu0
        %1345 = vdwg.mxu0
        %v1346 = vtanh.pop %v1343
        %1347 = vst.msk [vmem:[#allocation2 + $0x6] sm:$0x3] %vm402, %v1346
        %v1349 = vsel %vm246, %v1346, 0
        %1351 = vmatprep.subr.mxu0 0.0
        %1352 = vmatpush1.msra.mxu0 0.0
        %1353 = vmatprep.subr.mxu0 0.0
        %1354 = vmatpush1.msra.mxu0 0.0
        %1355 = vmatprep.subr.mxu0 0.0
        %1356 = vmatpush1.msra.mxu0 0.0
        %1357 = vmatprep.subr.mxu0 0.0
        %1358 = vmatpush1.msra.mxu0 0.0
        %1359 = vmatprep.subr.mxu0 0.0
        %1360 = vmatpush1.msra.mxu0 0.0
        %1361 = vmatprep.subr.mxu0 0.0
        %1362 = vmatpush1.msra.mxu0 0.0
        %1363 = vmatprep.subr.mxu0 0.0
        %1364 = vmatpush1.msra.mxu0 0.0
        %1365 = vmatprep.subr.mxu0 0.0
        %1366 = vmatpush1.msra.mxu0 0.0
        %1367 = vmatprep.subr.mxu0 0.0
        %1368 = vmatpush1.msra.mxu0 0.0
        %1369 = vmatprep.subr.mxu0 0.0
        %1370 = vmatpush1.msra.mxu0 0.0
        %1371 = vmatprep.subr.mxu0 0.0
        %1372 = vmatpush1.msra.mxu0 0.0
        %1373 = vmatprep.subr.mxu0 0.0
        %1374 = vmatpush1.msra.mxu0 0.0
        %1375 = vmatprep.subr.mxu0 0.0
        %1376 = vmatpush1.msra.mxu0 %v947
        %1377 = vmatprep.subr.mxu0 0.0
        %1378 = vmatpush1.msra.mxu0 %v946
        %1379 = vmatprep.subr.mxu0 0.0
        %1380 = vmatpush1.msra.mxu0 %v945
        %1381 = vmatprep.subr.mxu0 0.0
        %1382 = vmatpush1.msra.mxu0 %v944
        %1383 = vmatprep.subr.mxu0 0.0
        %1384 = vmatpush2.msra.mxu0 0.0
        %1385 = vmatprep.subr.mxu0 0.0
        %1386 = vmatpush2.msra.mxu0 0.0
        %1387 = vmatprep.subr.mxu0 0.0
        %1388 = vmatpush2.msra.mxu0 0.0
        %1389 = vmatprep.subr.mxu0 0.0
        %1390 = vmatpush2.msra.mxu0 0.0
        %1391 = vmatprep.subr.mxu0 0.0
        %1392 = vmatpush2.msra.mxu0 0.0
        %1393 = vmatprep.subr.mxu0 0.0
        %1394 = vmatpush2.msra.mxu0 0.0
        %1395 = vmatprep.subr.mxu0 0.0
        %1396 = vmatpush2.msra.mxu0 0.0
        %1397 = vmatprep.subr.mxu0 0.0
        %1398 = vmatpush2.msra.mxu0 0.0
        %1399 = vmatprep.subr.mxu0 0.0
        %1400 = vmatpush2.msra.mxu0 0.0
        %1401 = vmatprep.subr.mxu0 0.0
        %1402 = vmatpush2.msra.mxu0 0.0
        %1403 = vmatprep.subr.mxu0 0.0
        %1404 = vmatpush2.msra.mxu0 0.0
        %1405 = vmatprep.subr.mxu0 0.0
        %1406 = vmatpush2.msra.mxu0 0.0
        %1407 = vmatprep.subr.mxu0 0.0
        %1408 = vmatpush2.msra.mxu0 0.0
        %1409 = vmatprep.subr.mxu0 0.0
        %1410 = vmatpush2.msra.mxu0 0.0
        %1411 = vmatprep.subr.mxu0 0.0
        %1412 = vmatpush2.msra.mxu0 0.0
        %1413 = vmatprep.subr.mxu0 0.0
        %1414 = vmatpush2.msra.mxu0 0.0
        %1415 = vmatprep.mubr.f32.mxu0 0.0
        %1416 = vmatmul.mubr.f32.gmra.mxu0 %v1349
        %v1417 = vpop.f32.mrf.mxu0
        %v1418 = vadd.f32 %v1041, %v1417
        %v1419 = vpop.f32.mrf.mxu0
        %1420 = vdwg.mxu0
        %v1421 = vtanh.pop %v1418
        %1422 = vst.msk [vmem:[#allocation2 + $0x8] sm:$0x3] %vm402, %v1421
        %v1424 = vrot.slane %v1041, 2
        %v1427 = vsel %vm246, %v1421, 0
        %1429 = vmatprep.subr.mxu0 0.0
        %1430 = vmatpush1.msra.mxu0 0.0
        %1431 = vmatprep.subr.mxu0 0.0
        %1432 = vmatpush1.msra.mxu0 0.0
        %1433 = vmatprep.subr.mxu0 0.0
        %1434 = vmatpush1.msra.mxu0 0.0
        %1435 = vmatprep.subr.mxu0 0.0
        %1436 = vmatpush1.msra.mxu0 0.0
        %1437 = vmatprep.subr.mxu0 0.0
        %1438 = vmatpush1.msra.mxu0 0.0
        %1439 = vmatprep.subr.mxu0 0.0
        %1440 = vmatpush1.msra.mxu0 0.0
        %1441 = vmatprep.subr.mxu0 0.0
        %1442 = vmatpush1.msra.mxu0 0.0
        %1443 = vmatprep.subr.mxu0 0.0
        %1444 = vmatpush1.msra.mxu0 0.0
        %1445 = vmatprep.subr.mxu0 0.0
        %1446 = vmatpush1.msra.mxu0 0.0
        %1447 = vmatprep.subr.mxu0 0.0
        %1448 = vmatpush1.msra.mxu0 0.0
        %1449 = vmatprep.subr.mxu0 0.0
        %1450 = vmatpush1.msra.mxu0 0.0
        %1451 = vmatprep.subr.mxu0 0.0
        %1452 = vmatpush1.msra.mxu0 0.0
        %1453 = vmatprep.subr.mxu0 0.0
        %1454 = vmatpush1.msra.mxu0 %v947
        %1455 = vmatprep.subr.mxu0 0.0
        %1456 = vmatpush1.msra.mxu0 %v946
        %1457 = vmatprep.subr.mxu0 0.0
        %1458 = vmatpush1.msra.mxu0 %v945
        %1459 = vmatprep.subr.mxu0 0.0
        %1460 = vmatpush1.msra.mxu0 %v944
        %1461 = vmatprep.subr.mxu0 0.0
        %1462 = vmatpush2.msra.mxu0 0.0
        %1463 = vmatprep.subr.mxu0 0.0
        %1464 = vmatpush2.msra.mxu0 0.0
        %1465 = vmatprep.subr.mxu0 0.0
        %1466 = vmatpush2.msra.mxu0 0.0
        %1467 = vmatprep.subr.mxu0 0.0
        %1468 = vmatpush2.msra.mxu0 0.0
        %1469 = vmatprep.subr.mxu0 0.0
        %1470 = vmatpush2.msra.mxu0 0.0
        %1471 = vmatprep.subr.mxu0 0.0
        %1472 = vmatpush2.msra.mxu0 0.0
        %1473 = vmatprep.subr.mxu0 0.0
        %1474 = vmatpush2.msra.mxu0 0.0
        %1475 = vmatprep.subr.mxu0 0.0
        %1476 = vmatpush2.msra.mxu0 0.0
        %1477 = vmatprep.subr.mxu0 0.0
        %1478 = vmatpush2.msra.mxu0 0.0
        %1479 = vmatprep.subr.mxu0 0.0
        %1480 = vmatpush2.msra.mxu0 0.0
        %1481 = vmatprep.subr.mxu0 0.0
        %1482 = vmatpush2.msra.mxu0 0.0
        %1483 = vmatprep.subr.mxu0 0.0
        %1484 = vmatpush2.msra.mxu0 0.0
        %1485 = vmatprep.subr.mxu0 0.0
        %1486 = vmatpush2.msra.mxu0 0.0
        %1487 = vmatprep.subr.mxu0 0.0
        %1488 = vmatpush2.msra.mxu0 0.0
        %1489 = vmatprep.subr.mxu0 0.0
        %1490 = vmatpush2.msra.mxu0 0.0
        %1491 = vmatprep.subr.mxu0 0.0
        %1492 = vmatpush2.msra.mxu0 0.0
        %1493 = vmatprep.mubr.f32.mxu0 0.0
        %1494 = vmatmul.mubr.f32.gmra.mxu0 %v1427
        %v1495 = vpop.f32.mrf.mxu0
        %v1496 = vadd.f32 %v1424, %v1495
        %v1497 = vpop.f32.mrf.mxu0
        %1498 = vdwg.mxu0
        %v1499 = vtanh.pop %v1496
        %1500 = vst.msk [vmem:[#allocation2 + $0xa] sm:$0x3] %vm402, %v1499
        %v1501 = vrot.slane %v1041, 4
        %v1504 = vsel %vm246, %v1499, 0
        %1506 = vmatprep.subr.mxu0 0.0
        %1507 = vmatpush1.msra.mxu0 0.0
        %1508 = vmatprep.subr.mxu0 0.0
        %1509 = vmatpush1.msra.mxu0 0.0
        %1510 = vmatprep.subr.mxu0 0.0
        %1511 = vmatpush1.msra.mxu0 0.0
        %1512 = vmatprep.subr.mxu0 0.0
        %1513 = vmatpush1.msra.mxu0 0.0
        %1514 = vmatprep.subr.mxu0 0.0
        %1515 = vmatpush1.msra.mxu0 0.0
        %1516 = vmatprep.subr.mxu0 0.0
        %1517 = vmatpush1.msra.mxu0 0.0
        %1518 = vmatprep.subr.mxu0 0.0
        %1519 = vmatpush1.msra.mxu0 0.0
        %1520 = vmatprep.subr.mxu0 0.0
        %1521 = vmatpush1.msra.mxu0 0.0
        %1522 = vmatprep.subr.mxu0 0.0
        %1523 = vmatpush1.msra.mxu0 0.0
        %1524 = vmatprep.subr.mxu0 0.0
        %1525 = vmatpush1.msra.mxu0 0.0
        %1526 = vmatprep.subr.mxu0 0.0
        %1527 = vmatpush1.msra.mxu0 0.0
        %1528 = vmatprep.subr.mxu0 0.0
        %1529 = vmatpush1.msra.mxu0 0.0
        %1530 = vmatprep.subr.mxu0 0.0
        %1531 = vmatpush1.msra.mxu0 %v947
        %1532 = vmatprep.subr.mxu0 0.0
        %1533 = vmatpush1.msra.mxu0 %v946
        %1534 = vmatprep.subr.mxu0 0.0
        %1535 = vmatpush1.msra.mxu0 %v945
        %1536 = vmatprep.subr.mxu0 0.0
        %1537 = vmatpush1.msra.mxu0 %v944
        %1538 = vmatprep.subr.mxu0 0.0
        %1539 = vmatpush2.msra.mxu0 0.0
        %1540 = vmatprep.subr.mxu0 0.0
        %1541 = vmatpush2.msra.mxu0 0.0
        %1542 = vmatprep.subr.mxu0 0.0
        %1543 = vmatpush2.msra.mxu0 0.0
        %1544 = vmatprep.subr.mxu0 0.0
        %1545 = vmatpush2.msra.mxu0 0.0
        %1546 = vmatprep.subr.mxu0 0.0
        %1547 = vmatpush2.msra.mxu0 0.0
        %1548 = vmatprep.subr.mxu0 0.0
        %1549 = vmatpush2.msra.mxu0 0.0
        %1550 = vmatprep.subr.mxu0 0.0
        %1551 = vmatpush2.msra.mxu0 0.0
        %1552 = vmatprep.subr.mxu0 0.0
        %1553 = vmatpush2.msra.mxu0 0.0
        %1554 = vmatprep.subr.mxu0 0.0
        %1555 = vmatpush2.msra.mxu0 0.0
        %1556 = vmatprep.subr.mxu0 0.0
        %1557 = vmatpush2.msra.mxu0 0.0
        %1558 = vmatprep.subr.mxu0 0.0
        %1559 = vmatpush2.msra.mxu0 0.0
        %1560 = vmatprep.subr.mxu0 0.0
        %1561 = vmatpush2.msra.mxu0 0.0
        %1562 = vmatprep.subr.mxu0 0.0
        %1563 = vmatpush2.msra.mxu0 0.0
        %1564 = vmatprep.subr.mxu0 0.0
        %1565 = vmatpush2.msra.mxu0 0.0
        %1566 = vmatprep.subr.mxu0 0.0
        %1567 = vmatpush2.msra.mxu0 0.0
        %1568 = vmatprep.subr.mxu0 0.0
        %1569 = vmatpush2.msra.mxu0 0.0
        %1570 = vmatprep.mubr.f32.mxu0 0.0
        %1571 = vmatmul.mubr.f32.gmra.mxu0 %v1504
        %v1572 = vpop.f32.mrf.mxu0
        %v1573 = vadd.f32 %v1501, %v1572
        %v1574 = vpop.f32.mrf.mxu0
        %1575 = vdwg.mxu0
        %v1576 = vtanh.pop %v1573
        %1577 = vst.msk [vmem:[#allocation2 + $0xc] sm:$0x3] %vm402, %v1576
        %v1578 = vrot.slane %v1041, 6
        %v1581 = vsel %vm246, %v1576, 0
        %1583 = vmatprep.subr.mxu0 0.0
        %1584 = vmatpush1.msra.mxu0 0.0
        %1585 = vmatprep.subr.mxu0 0.0
        %1586 = vmatpush1.msra.mxu0 0.0
        %1587 = vmatprep.subr.mxu0 0.0
        %1588 = vmatpush1.msra.mxu0 0.0
        %1589 = vmatprep.subr.mxu0 0.0
        %1590 = vmatpush1.msra.mxu0 0.0
        %1591 = vmatprep.subr.mxu0 0.0
        %1592 = vmatpush1.msra.mxu0 0.0
        %1593 = vmatprep.subr.mxu0 0.0
        %1594 = vmatpush1.msra.mxu0 0.0
        %1595 = vmatprep.subr.mxu0 0.0
        %1596 = vmatpush1.msra.mxu0 0.0
        %1597 = vmatprep.subr.mxu0 0.0
        %1598 = vmatpush1.msra.mxu0 0.0
        %1599 = vmatprep.subr.mxu0 0.0
        %1600 = vmatpush1.msra.mxu0 0.0
        %1601 = vmatprep.subr.mxu0 0.0
        %1602 = vmatpush1.msra.mxu0 0.0
        %1603 = vmatprep.subr.mxu0 0.0
        %1604 = vmatpush1.msra.mxu0 0.0
        %1605 = vmatprep.subr.mxu0 0.0
        %1606 = vmatpush1.msra.mxu0 0.0
        %1607 = vmatprep.subr.mxu0 0.0
        %1608 = vmatpush1.msra.mxu0 %v947
        %1609 = vmatprep.subr.mxu0 0.0
        %1610 = vmatpush1.msra.mxu0 %v946
        %1611 = vmatprep.subr.mxu0 0.0
        %1612 = vmatpush1.msra.mxu0 %v945
        %1613 = vmatprep.subr.mxu0 0.0
        %1614 = vmatpush1.msra.mxu0 %v944
        %1615 = vmatprep.subr.mxu0 0.0
        %1616 = vmatpush2.msra.mxu0 0.0
        %1617 = vmatprep.subr.mxu0 0.0
        %1618 = vmatpush2.msra.mxu0 0.0
        %1619 = vmatprep.subr.mxu0 0.0
        %1620 = vmatpush2.msra.mxu0 0.0
        %1621 = vmatprep.subr.mxu0 0.0
        %1622 = vmatpush2.msra.mxu0 0.0
        %1623 = vmatprep.subr.mxu0 0.0
        %1624 = vmatpush2.msra.mxu0 0.0
        %1625 = vmatprep.subr.mxu0 0.0
        %1626 = vmatpush2.msra.mxu0 0.0
        %1627 = vmatprep.subr.mxu0 0.0
        %1628 = vmatpush2.msra.mxu0 0.0
        %1629 = vmatprep.subr.mxu0 0.0
        %1630 = vmatpush2.msra.mxu0 0.0
        %1631 = vmatprep.subr.mxu0 0.0
        %1632 = vmatpush2.msra.mxu0 0.0
        %1633 = vmatprep.subr.mxu0 0.0
        %1634 = vmatpush2.msra.mxu0 0.0
        %1635 = vmatprep.subr.mxu0 0.0
        %1636 = vmatpush2.msra.mxu0 0.0
        %1637 = vmatprep.subr.mxu0 0.0
        %1638 = vmatpush2.msra.mxu0 0.0
        %1639 = vmatprep.subr.mxu0 0.0
        %1640 = vmatpush2.msra.mxu0 0.0
        %1641 = vmatprep.subr.mxu0 0.0
        %1642 = vmatpush2.msra.mxu0 0.0
        %1643 = vmatprep.subr.mxu0 0.0
        %1644 = vmatpush2.msra.mxu0 0.0
        %1645 = vmatprep.subr.mxu0 0.0
        %1646 = vmatpush2.msra.mxu0 0.0
        %1647 = vmatprep.mubr.f32.mxu0 0.0
        %1648 = vmatmul.mubr.f32.gmra.mxu0 %v1581
        %v1649 = vpop.f32.mrf.mxu0
        %v1650 = vadd.f32 %v1578, %v1649
        %v1651 = vpop.f32.mrf.mxu0
        %1652 = vdwg.mxu0
        %v1653 = vtanh.pop %v1650
        %1654 = vst.msk [vmem:[#allocation2 + $0xe] sm:$0x3] %vm402, %v1653
        %v1655 = vld [vmem:[#allocation2] sm:$0xff]
        %v1656 = vld [vmem:[#allocation2 + $0x8] sm:$0xff]
        %1657 = vst.msk [vmem:[%s219] sm:$0xff] %vm246, %v1655
        %1658 = vst.msk [vmem:[%s219 + $0x8] sm:$0xff] %vm246, %v1656
        %s1659 = sand.u32 %s112, 1
        %s1660 = scalar_lea.sflag [#allocation5], %s1659
        %s1661 = sand.u32 %s112, 1
        %s1662 = smul.addr %s1661, 16
        %s1663 = scalar_lea.vmem [#allocation9], %s1662
        // Predicated region
        $region53: #{tpu_custom_call.1} parent=35 // pred_check
          %p1664 = pneg %p122
        $region54: #{tpu_custom_call.1} parent=35 // pred_check_branch
          %1666 = sbr.rel (%p1664) target = $region56
        $region55: #{tpu_custom_call.1} parent=35 // pred_region
          %s1668 = ssub.s32 256, 256
          %1669 = vsyncadd %s1660, %s1668
          %s1670 = smul.addr %s20, 2
          %s1671 = smul.addr %s1670, 128
          %s1672 = scalar_lea.hbm %s4, %s1671
          %s1673 = sshll.u32 %s1663, 4
          %s1674 = int_to_ptr.vmem [resolvable:$true] %s1673
          %1679 = dma.vmem_to_hbm [thread:$0]  %s1674, 256, %s1672, %s1660, 128, 128, 8
        $region56: #{tpu_custom_call.1} parent=35 // pred_fallthru
          _
      $region36: #{tpu_custom_call.1} parent=5 // pred_fallthru
        _
      %p1680 = scmp.le.s32.totalorder 2, %s15
      // Predicated region
      $region57: #{tpu_custom_call.1} parent=5 // pred_check
        %p1681 = pneg %p1680
      $region58: #{tpu_custom_call.1} parent=5 // pred_check_branch
        %1683 = sbr.rel (%p1681) target = $region60
      $region59: #{tpu_custom_call.1} parent=5 // pred_region
        %s1684 = ssub.s32 %s15, 2
        // Predicated region
        $region61: #{tpu_custom_call.1} parent=59 // pred_check
          %p1685 = pneg %p128
        $region62: #{tpu_custom_call.1} parent=59 // pred_check_branch
          %1687 = sbr.rel (%p1685) target = $region64
        $region63: #{tpu_custom_call.1} parent=59 // pred_region
          %s1688 = sand.u32 %s113, 1
          %s1689 = scalar_lea.sflag [#allocation5], %s1688
          %s1690 = sand.u32 %s113, 1
          %s1691 = smul.addr %s1690, 16
          %s1692 = scalar_lea.vmem [#allocation9], %s1691
          %1693 = dma.done %s1689, 256
        $region64: #{tpu_custom_call.1} parent=59 // pred_fallthru
          _
      $region60: #{tpu_custom_call.1} parent=5 // pred_fallthru
        _
    $region6: #{tpu_custom_call.1} parent=1 // loop_footer
      %s19 = sadd.s32 1, %s15
    $region7: #{tpu_custom_call.1} parent=1 // loop_footer_branch
      %14 = sbr.rel target = $region3
    $region8: #{tpu_custom_call.1} parent=1 // loop_exit
      _
    %1694 = vsyncpa [#allocation4], 1
    %s1695 = scalar_lea.sflag [#allocation4], 1
    %1696 = vsyncpa %s1695, 1
    %1697 = vsyncpa [#allocation7], 1
    %1698 = vsyncpa [#allocation5], 1
    %s1699 = scalar_lea.sflag [#allocation5], 1
    %1700 = vsyncpa %s1699, 1

</llo_original>
